<compile_context>
chip_gen: v6e
topology: v6e:2x2x1
jax: 0.10.0
libtpu: 0.0.40
codegen_flags: <defaults>
</compile_context>

<pallas_src>
import jax
import jax.numpy as jnp
from jax.experimental import pallas as pl
from jax.experimental.pallas import tpu as pltpu


_VMEM_LIMIT = 32 * 1024 * 1024  # explicit scoped-VMEM cap, safe on v5e/v6e/v7x
_MAX_ROW_TILE = 512             # rows per GEMM tile (multiple of 8)


def _round_up(n, m):
    return ((n + m - 1) // m) * m


def _row_tile(m):
    # Full extent when small (always a legal block shape), else a fixed
    # 512-row tile so the double-buffered working set stays tiny.
    return m if m <= _MAX_ROW_TILE else _MAX_ROW_TILE


# ----------------------------- Pallas kernels ------------------------------

def _gemm_bias_relu_kernel(x_ref, w_ref, b_ref, o_ref):
    # x: (TM, K) bf16, w: (K, OC) bf16, b: (1, OC) f32 -> ReLU(x@w + b) in f32.
    acc = jnp.dot(x_ref[...], w_ref[...], preferred_element_type=jnp.float32)
    o_ref[...] = jnp.maximum(acc + b_ref[...], 0.0)


def _fc_chain_kernel(x_ref, w1_ref, b1_ref, w2_ref, b2_ref, w3_ref, b3_ref, o_ref):
    # Fused fc1 -> ReLU -> fc2 -> ReLU -> fc3. All widths padded to 128 lanes;
    # intermediates live in vregs/VMEM, only the final (TM, 128) block is stored.
    h = jnp.dot(x_ref[...], w1_ref[...], preferred_element_type=jnp.float32)
    h = jnp.maximum(h + b1_ref[...], 0.0).astype(jnp.bfloat16)
    h = jnp.dot(h, w2_ref[...], preferred_element_type=jnp.float32)
    h = jnp.maximum(h + b2_ref[...], 0.0).astype(jnp.bfloat16)
    o_ref[...] = jnp.dot(h, w3_ref[...], preferred_element_type=jnp.float32) + b3_ref[...]


# ----------------------------- Pallas wrappers ------------------------------

def _conv_gemm_relu(patches, w, b):
    """patches: (M, Kp) bf16, w: (Kp, OC) bf16, b: (1, OC) f32 -> (M, OC) f32."""
    M, K = patches.shape
    Kw, OC = w.shape
    assert K == Kw
    tm = _row_tile(M)
    return pl.pallas_call(
        _gemm_bias_relu_kernel,
        out_shape=jax.ShapeDtypeStruct((M, OC), jnp.float32),
        grid=(pl.cdiv(M, tm),),
        in_specs=[
            pl.BlockSpec((tm, K), lambda i: (i, 0)),     # row-tiled patches
            pl.BlockSpec((K, OC), lambda i: (0, 0)),     # full weight block
            pl.BlockSpec((1, OC), lambda i: (0, 0)),     # bias
        ],
        out_specs=pl.BlockSpec((tm, OC), lambda i: (i, 0)),
        compiler_params=pltpu.CompilerParams(
            dimension_semantics=("parallel",),
            vmem_limit_bytes=_VMEM_LIMIT,
        ),
    )(patches, w, b)


def _fc_chain(x, w1, b1, w2, b2, w3, b3):
    """x: (N, 400) f32 -> logits (N, 128) f32 (columns >= 10 are padding)."""
    N, K = x.shape
    OC = w3.shape[1]
    tn = _row_tile(N)
    return pl.pallas_call(
        _fc_chain_kernel,
        out_shape=jax.ShapeDtypeStruct((N, OC), jnp.float32),
        grid=(pl.cdiv(N, tn),),
        in_specs=[
            pl.BlockSpec((tn, K), lambda i: (i, 0)),
            pl.BlockSpec(w1.shape, lambda i: (0, 0)),
            pl.BlockSpec(b1.shape, lambda i: (0, 0)),
            pl.BlockSpec(w2.shape, lambda i: (0, 0)),
            pl.BlockSpec(b2.shape, lambda i: (0, 0)),
            pl.BlockSpec(w3.shape, lambda i: (0, 0)),
            pl.BlockSpec(b3.shape, lambda i: (0, 0)),
        ],
        out_specs=pl.BlockSpec((tn, OC), lambda i: (i, 0)),
        compiler_params=pltpu.CompilerParams(
            dimension_semantics=("parallel",),
            vmem_limit_bytes=_VMEM_LIMIT,
        ),
    )(x.astype(jnp.bfloat16), w1, b1, w2, b2, w3, b3)


# ------------------------------- glue (JAX) ---------------------------------

def _im2col_nhwc(x, K):
    """x: (N, H, W, C) NHWC -> (N*OH*OW, K*K*C), features in (ki, kj, c) order."""
    N, H, W, C = x.shape
    OH, OW = H - K + 1, W - K + 1
    cols = [x[:, ki:ki + OH, kj:kj + OW, :] for ki in range(K) for kj in range(K)]
    p = jnp.stack(cols, axis=3)                      # (N, OH, OW, K*K, C)
    return p.reshape(N * OH * OW, K * K * C), OH, OW


def conv2d_relu_nhwc(x, w_kn, b_1n, K=5):
    """x NHWC; w_kn: (round_up(K*K*C,128), OC) bf16 with rows in (ki,kj,c) order."""
    N, H, W, C = x.shape
    OC = w_kn.shape[1]
    patches, OH, OW = _im2col_nhwc(x, K)             # (M, K*K*C) f32
    kpad = w_kn.shape[0] - patches.shape[1]
    if kpad:
        patches = jnp.pad(patches, ((0, 0), (0, kpad)))   # pad K dim to 128-multiple
    patches = patches.astype(jnp.bfloat16)
    out = _conv_gemm_relu(patches, w_kn, b_1n)       # (M, OC) f32
    return out.reshape(N, OH, OW, OC)                # NHWC


def maxpool2x2_nhwc(x):
    """x: (N, H, W, C) -> (N, H//2, W//2, C), kernel 2, stride 2 (plain JAX)."""
    N, H, W, C = x.shape
    x = x.reshape(N, H // 2, 2, W // 2, 2, C)
    return x.max(axis=(2, 4))


# ------------------------------ parameters ----------------------------------

def init_params(key):
    """Deterministic PyTorch-style uniform(-1/sqrt(fan_in), 1/sqrt(fan_in))."""
    def uni(k, shape, fan_in):
        bound = 1.0 / jnp.sqrt(jnp.float32(fan_in))
        return jax.random.uniform(k, shape, jnp.float32, -bound, bound)

    ks = jax.random.split(key, 10)
    p = {}
    p["conv1_w"] = uni(ks[0], (6, 3, 5, 5), 3 * 5 * 5)
    p["conv1_b"] = uni(ks[1], (6,), 3 * 5 * 5)
    p["conv2_w"] = uni(ks[2], (16, 6, 5, 5), 6 * 5 * 5)
    p["conv2_b"] = uni(ks[3], (16,), 6 * 5 * 5)
    p["fc1_w"] = uni(ks[4], (400, 120), 400)   # (in, out); rows in torch (c,h,w) order
    p["fc1_b"] = uni(ks[5], (120,), 400)
    p["fc2_w"] = uni(ks[6], (120, 84), 120)
    p["fc2_b"] = uni(ks[7], (84,), 120)
    p["fc3_w"] = uni(ks[8], (84, 10), 84)
    p["fc3_b"] = uni(ks[9], (10,), 84)
    return p


def prepare_params(p):
    """One-time layout prep (hoisted out of the forward graph): transpose conv
    weights to im2col (ki,kj,c) order, zero-pad contraction/lane dims to
    128-multiples, permute fc1 rows for the NHWC flatten, and cast to bf16."""
    def pad_cols(a, n):
        return jnp.pad(a, ((0, 0), (0, n - a.shape[1])))

    def pad_rows(a, n):
        return jnp.pad(a, ((0, n - a.shape[0]), (0, 0)))

    def conv_w(w):
        # (OC, C, K, K) -> (round_up(K*K*C, 128), OC), rows in (ki, kj, c) order
        OC, C, K, _ = w.shape
        w2 = jnp.transpose(w, (2, 3, 1, 0)).reshape(K * K * C, OC)
        return pad_rows(w2, _round_up(K * K * C, 128)).astype(jnp.bfloat16)

    prep = {}
    prep["conv1_w"] = conv_w(p["conv1_w"])                    # (128, 6) bf16
    prep["conv1_b"] = p["conv1_b"].reshape(1, -1)             # (1, 6) f32
    prep["conv2_w"] = conv_w(p["conv2_w"])                    # (256, 16) bf16
    prep["conv2_b"] = p["conv2_b"].reshape(1, -1)             # (1, 16) f32

    # fc1 consumes the NHWC flatten (h, w, c); permute its rows from the torch
    # NCHW flatten order (c, h, w) so no runtime feature-map transpose is needed.
    w1 = p["fc1_w"].reshape(16, 5, 5, 120).transpose(1, 2, 0, 3).reshape(400, 120)
    prep["fc1_w"] = pad_cols(w1, 128).astype(jnp.bfloat16)                          # (400, 128)
    prep["fc1_b"] = pad_cols(p["fc1_b"].reshape(1, -1), 128)                        # (1, 128) f32
    prep["fc2_w"] = pad_cols(pad_rows(p["fc2_w"], 128), 128).astype(jnp.bfloat16)   # (128, 128)
    prep["fc2_b"] = pad_cols(p["fc2_b"].reshape(1, -1), 128)
    prep["fc3_w"] = pad_cols(pad_rows(p["fc3_w"], 128), 128).astype(jnp.bfloat16)   # (128, 128)
    prep["fc3_b"] = pad_cols(p["fc3_b"].reshape(1, -1), 128)
    return prep


# -------------------------------- forward -----------------------------------

@jax.jit
def net_forward(prep, x):
    # x: (N, 3, 32, 32) NCHW f32 (matches the PyTorch interface)
    x = jnp.transpose(x, (0, 2, 3, 1))                                  # NHWC, once
    x = conv2d_relu_nhwc(x, prep["conv1_w"], prep["conv1_b"])           # (N,28,28,6)
    x = maxpool2x2_nhwc(x)                                              # (N,14,14,6)
    x = conv2d_relu_nhwc(x, prep["conv2_w"], prep["conv2_b"])           # (N,10,10,16)
    x = maxpool2x2_nhwc(x)                                              # (N,5,5,16)
    N = x.shape[0]
    x = x.reshape(N, 5 * 5 * 16)        # (h,w,c) flatten; fc1_w rows pre-permuted
    logits = _fc_chain(x, prep["fc1_w"], prep["fc1_b"],
                       prep["fc2_w"], prep["fc2_b"],
                       prep["fc3_w"], prep["fc3_b"])                    # (N, 128)
    return logits[:, :10]

# TODO(synk): for large batches, avoid materializing the im2col patch matrix in
# HBM by streaming NHWC windows inside the kernel (manual DMA, memory_space=pl.ANY).


if __name__ == "__main__":
    key = jax.random.PRNGKey(0)
    pkey, xkey = jax.random.split(key)
    params = init_params(pkey)
    prep = prepare_params(params)
    x = jax.random.normal(xkey, (2, 3, 32, 32), dtype=jnp.float32)

    out = net_forward(prep, x)
    out = jax.block_until_ready(out)
    assert out.shape == (2, 10) and out.dtype == jnp.float32
    print("KERNEL_OK")
</pallas_src>

<mosaic_0001>
module attributes {stable_mosaic.version = 11 : i64} {
  func.func @_gemm_bias_relu_kernel(%arg0: i32, %arg1: memref<512x128xbf16, #tpu.memory_space<vmem>>, %arg2: memref<128x6xbf16, #tpu.memory_space<vmem>>, %arg3: memref<1x6xf32, #tpu.memory_space<vmem>>, %arg4: memref<512x6xf32, #tpu.memory_space<vmem>>) attributes {dimension_semantics = [#tpu.dimension_semantics<parallel>], iteration_bounds = array<i64: 4>, scalar_prefetch = 0 : i64, scratch_operands = 0 : i64, tpu.core_type = #tpu.core_type<tc>, window_params = [{transform_indices = @transform_0, window_bounds = array<i64: 512, 128>}, {pipeline_mode = #tpu.pipeline_mode<synchronous>, transform_indices = @transform_1, window_bounds = array<i64: 128, 6>}, {pipeline_mode = #tpu.pipeline_mode<synchronous>, transform_indices = @transform_2, window_bounds = array<i64: 1, 6>}, {transform_indices = @transform_3, window_bounds = array<i64: 512, 6>}]} {
    %c0 = arith.constant 0 : index
    %c0_0 = arith.constant 0 : index
    %0 = vector.load %arg1[%c0, %c0_0] : memref<512x128xbf16, #tpu.memory_space<vmem>>, vector<512x128xbf16>
    %c0_1 = arith.constant 0 : index
    %c0_2 = arith.constant 0 : index
    %1 = vector.load %arg2[%c0_1, %c0_2] : memref<128x6xbf16, #tpu.memory_space<vmem>>, vector<128x6xbf16>
    %cst = arith.constant dense<0.000000e+00> : vector<512x6xf32>
    %2 = tpu.matmul %0, %1, %cst {dimension_numbers = #tpu.dot_dimension_numbers<[1], [0], [0], [1], [0, 0, 1, 1], [], []>} : vector<512x128xbf16>, vector<128x6xbf16>, vector<512x6xf32> -> vector<512x6xf32>
    %c0_3 = arith.constant 0 : index
    %c0_4 = arith.constant 0 : index
    %3 = vector.load %arg3[%c0_3, %c0_4] : memref<1x6xf32, #tpu.memory_space<vmem>>, vector<1x6xf32>
    %4 = vector.broadcast %3 : vector<1x6xf32> to vector<512x6xf32>
    %5 = arith.addf %2, %4 : vector<512x6xf32>
    %cst_5 = arith.constant 0.000000e+00 : f32
    %6 = vector.broadcast %cst_5 : f32 to vector<512x6xf32>
    %7 = arith.maximumf %5, %6 : vector<512x6xf32>
    %c0_6 = arith.constant 0 : index
    %c0_7 = arith.constant 0 : index
    %8 = vector.load %arg4[%c0_6, %c0_7] : memref<512x6xf32, #tpu.memory_space<vmem>>, vector<512x6xf32>
    tpu.vector_store %arg4[%c0_6, %c0_7], %7 {strides = array<i32>} : memref<512x6xf32, #tpu.memory_space<vmem>>, vector<512x6xf32>,
    return
  }
  func.func @transform_0(%arg0: i32) -> (i32, i32) {
    %c0_i32 = arith.constant 0 : i32
    %c0_i32_0 = arith.constant 0 : i32
    return %arg0, %c0_i32 : i32, i32
  }
  func.func @transform_1(%arg0: i32) -> (i32, i32) {
    %c0_i32 = arith.constant 0 : i32
    %c0_i32_0 = arith.constant 0 : i32
    %c0_i32_1 = arith.constant 0 : i32
    return %c0_i32, %c0_i32_0 : i32, i32
  }
  func.func @transform_2(%arg0: i32) -> (i32, i32) {
    %c0_i32 = arith.constant 0 : i32
    %c0_i32_0 = arith.constant 0 : i32
    %c0_i32_1 = arith.constant 0 : i32
    return %c0_i32, %c0_i32_0 : i32, i32
  }
  func.func @transform_3(%arg0: i32) -> (i32, i32) {
    %c0_i32 = arith.constant 0 : i32
    %c0_i32_0 = arith.constant 0 : i32
    return %arg0, %c0_i32 : i32, i32
  }
}

module attributes {stable_mosaic.version = 11 : i64} {
  func.func @_gemm_bias_relu_kernel(%arg0: i32, %arg1: memref<200x256xbf16, #tpu.memory_space<vmem>>, %arg2: memref<256x16xbf16, #tpu.memory_space<vmem>>, %arg3: memref<1x16xf32, #tpu.memory_space<vmem>>, %arg4: memref<200x16xf32, #tpu.memory_space<vmem>>) attributes {dimension_semantics = [#tpu.dimension_semantics<parallel>], iteration_bounds = array<i64: 1>, scalar_prefetch = 0 : i64, scratch_operands = 0 : i64, tpu.core_type = #tpu.core_type<tc>, window_params = [{transform_indices = @transform_0, window_bounds = array<i64: 200, 256>}, {pipeline_mode = #tpu.pipeline_mode<synchronous>, transform_indices = @transform_1, window_bounds = array<i64: 256, 16>}, {pipeline_mode = #tpu.pipeline_mode<synchronous>, transform_indices = @transform_2, window_bounds = array<i64: 1, 16>}, {transform_indices = @transform_3, window_bounds = array<i64: 200, 16>}]} {
    %c0 = arith.constant 0 : index
    %c0_0 = arith.constant 0 : index
    %0 = vector.load %arg1[%c0, %c0_0] : memref<200x256xbf16, #tpu.memory_space<vmem>>, vector<200x256xbf16>
    %c0_1 = arith.constant 0 : index
    %c0_2 = arith.constant 0 : index
    %1 = vector.load %arg2[%c0_1, %c0_2] : memref<256x16xbf16, #tpu.memory_space<vmem>>, vector<256x16xbf16>
    %cst = arith.constant dense<0.000000e+00> : vector<200x16xf32>
    %2 = tpu.matmul %0, %1, %cst {dimension_numbers = #tpu.dot_dimension_numbers<[1], [0], [0], [1], [0, 0, 1, 1], [], []>} : vector<200x256xbf16>, vector<256x16xbf16>, vector<200x16xf32> -> vector<200x16xf32>
    %c0_3 = arith.constant 0 : index
    %c0_4 = arith.constant 0 : index
    %3 = vector.load %arg3[%c0_3, %c0_4] : memref<1x16xf32, #tpu.memory_space<vmem>>, vector<1x16xf32>
    %4 = vector.broadcast %3 : vector<1x16xf32> to vector<200x16xf32>
    %5 = arith.addf %2, %4 : vector<200x16xf32>
    %cst_5 = arith.constant 0.000000e+00 : f32
    %6 = vector.broadcast %cst_5 : f32 to vector<200x16xf32>
    %7 = arith.maximumf %5, %6 : vector<200x16xf32>
    %c0_6 = arith.constant 0 : index
    %c0_7 = arith.constant 0 : index
    %8 = vector.load %arg4[%c0_6, %c0_7] : memref<200x16xf32, #tpu.memory_space<vmem>>, vector<200x16xf32>
    tpu.vector_store %arg4[%c0_6, %c0_7], %7 {strides = array<i32>} : memref<200x16xf32, #tpu.memory_space<vmem>>, vector<200x16xf32>,
    return
  }
  func.func @transform_0(%arg0: i32) -> (i32, i32) {
    %c0_i32 = arith.constant 0 : i32
    %c0_i32_0 = arith.constant 0 : i32
    return %arg0, %c0_i32 : i32, i32
  }
  func.func @transform_1(%arg0: i32) -> (i32, i32) {
    %c0_i32 = arith.constant 0 : i32
    %c0_i32_0 = arith.constant 0 : i32
    %c0_i32_1 = arith.constant 0 : i32
    return %c0_i32, %c0_i32_0 : i32, i32
  }
  func.func @transform_2(%arg0: i32) -> (i32, i32) {
    %c0_i32 = arith.constant 0 : i32
    %c0_i32_0 = arith.constant 0 : i32
    %c0_i32_1 = arith.constant 0 : i32
    return %c0_i32, %c0_i32_0 : i32, i32
  }
  func.func @transform_3(%arg0: i32) -> (i32, i32) {
    %c0_i32 = arith.constant 0 : i32
    %c0_i32_0 = arith.constant 0 : i32
    return %arg0, %c0_i32 : i32, i32
  }
}

module attributes {stable_mosaic.version = 11 : i64} {
  func.func @_fc_chain_kernel(%arg0: i32, %arg1: memref<2x400xbf16, #tpu.memory_space<vmem>>, %arg2: memref<400x128xbf16, #tpu.memory_space<vmem>>, %arg3: memref<1x128xf32, #tpu.memory_space<vmem>>, %arg4: memref<128x128xbf16, #tpu.memory_space<vmem>>, %arg5: memref<1x128xf32, #tpu.memory_space<vmem>>, %arg6: memref<128x128xbf16, #tpu.memory_space<vmem>>, %arg7: memref<1x128xf32, #tpu.memory_space<vmem>>, %arg8: memref<2x128xf32, #tpu.memory_space<vmem>>) attributes {dimension_semantics = [#tpu.dimension_semantics<parallel>], iteration_bounds = array<i64: 1>, scalar_prefetch = 0 : i64, scratch_operands = 0 : i64, tpu.core_type = #tpu.core_type<tc>, window_params = [{transform_indices = @transform_0, window_bounds = array<i64: 2, 400>}, {pipeline_mode = #tpu.pipeline_mode<synchronous>, transform_indices = @transform_1, window_bounds = array<i64: 400, 128>}, {pipeline_mode = #tpu.pipeline_mode<synchronous>, transform_indices = @transform_2, window_bounds = array<i64: 1, 128>}, {pipeline_mode = #tpu.pipeline_mode<synchronous>, transform_indices = @transform_3, window_bounds = array<i64: 128, 128>}, {pipeline_mode = #tpu.pipeline_mode<synchronous>, transform_indices = @transform_4, window_bounds = array<i64: 1, 128>}, {pipeline_mode = #tpu.pipeline_mode<synchronous>, transform_indices = @transform_5, window_bounds = array<i64: 128, 128>}, {pipeline_mode = #tpu.pipeline_mode<synchronous>, transform_indices = @transform_6, window_bounds = array<i64: 1, 128>}, {transform_indices = @transform_7, window_bounds = array<i64: 2, 128>}]} {
    %c0 = arith.constant 0 : index
    %c0_0 = arith.constant 0 : index
    %0 = vector.load %arg1[%c0, %c0_0] : memref<2x400xbf16, #tpu.memory_space<vmem>>, vector<2x400xbf16>
    %c0_1 = arith.constant 0 : index
    %c0_2 = arith.constant 0 : index
    %1 = vector.load %arg2[%c0_1, %c0_2] : memref<400x128xbf16, #tpu.memory_space<vmem>>, vector<400x128xbf16>
    %cst = arith.constant dense<0.000000e+00> : vector<2x128xf32>
    %2 = tpu.matmul %0, %1, %cst {dimension_numbers = #tpu.dot_dimension_numbers<[1], [0], [0], [1], [0, 0, 1, 1], [], []>} : vector<2x400xbf16>, vector<400x128xbf16>, vector<2x128xf32> -> vector<2x128xf32>
    %c0_3 = arith.constant 0 : index
    %c0_4 = arith.constant 0 : index
    %3 = vector.load %arg3[%c0_3, %c0_4] : memref<1x128xf32, #tpu.memory_space<vmem>>, vector<1x128xf32>
    %4 = vector.broadcast %3 : vector<1x128xf32> to vector<2x128xf32>
    %5 = arith.addf %2, %4 : vector<2x128xf32>
    %cst_5 = arith.constant 0.000000e+00 : f32
    %6 = vector.broadcast %cst_5 : f32 to vector<2x128xf32>
    %7 = arith.maximumf %5, %6 : vector<2x128xf32>
    %8 = arith.truncf %7 : vector<2x128xf32> to vector<2x128xbf16>
    %c0_6 = arith.constant 0 : index
    %c0_7 = arith.constant 0 : index
    %9 = vector.load %arg4[%c0_6, %c0_7] : memref<128x128xbf16, #tpu.memory_space<vmem>>, vector<128x128xbf16>
    %cst_8 = arith.constant dense<0.000000e+00> : vector<2x128xf32>
    %10 = tpu.matmul %8, %9, %cst_8 {dimension_numbers = #tpu.dot_dimension_numbers<[1], [0], [0], [1], [0, 0, 1, 1], [], []>} : vector<2x128xbf16>, vector<128x128xbf16>, vector<2x128xf32> -> vector<2x128xf32>
    %c0_9 = arith.constant 0 : index
    %c0_10 = arith.constant 0 : index
    %11 = vector.load %arg5[%c0_9, %c0_10] : memref<1x128xf32, #tpu.memory_space<vmem>>, vector<1x128xf32>
    %12 = vector.broadcast %11 : vector<1x128xf32> to vector<2x128xf32>
    %13 = arith.addf %10, %12 : vector<2x128xf32>
    %cst_11 = arith.constant 0.000000e+00 : f32
    %14 = vector.broadcast %cst_11 : f32 to vector<2x128xf32>
    %15 = arith.maximumf %13, %14 : vector<2x128xf32>
    %16 = arith.truncf %15 : vector<2x128xf32> to vector<2x128xbf16>
    %c0_12 = arith.constant 0 : index
    %c0_13 = arith.constant 0 : index
    %17 = vector.load %arg6[%c0_12, %c0_13] : memref<128x128xbf16, #tpu.memory_space<vmem>>, vector<128x128xbf16>
    %cst_14 = arith.constant dense<0.000000e+00> : vector<2x128xf32>
    %18 = tpu.matmul %16, %17, %cst_14 {dimension_numbers = #tpu.dot_dimension_numbers<[1], [0], [0], [1], [0, 0, 1, 1], [], []>} : vector<2x128xbf16>, vector<128x128xbf16>, vector<2x128xf32> -> vector<2x128xf32>
    %c0_15 = arith.constant 0 : index
    %c0_16 = arith.constant 0 : index
    %19 = vector.load %arg7[%c0_15, %c0_16] : memref<1x128xf32, #tpu.memory_space<vmem>>, vector<1x128xf32>
    %20 = vector.broadcast %19 : vector<1x128xf32> to vector<2x128xf32>
    %21 = arith.addf %18, %20 : vector<2x128xf32>
    %c0_17 = arith.constant 0 : index
    %c0_18 = arith.constant 0 : index
    %22 = vector.load %arg8[%c0_17, %c0_18] : memref<2x128xf32, #tpu.memory_space<vmem>>, vector<2x128xf32>
    tpu.vector_store %arg8[%c0_17, %c0_18], %21 {strides = array<i32>} : memref<2x128xf32, #tpu.memory_space<vmem>>, vector<2x128xf32>,
    return
  }
  func.func @transform_0(%arg0: i32) -> (i32, i32) {
    %c0_i32 = arith.constant 0 : i32
    %c0_i32_0 = arith.constant 0 : i32
    return %arg0, %c0_i32 : i32, i32
  }
  func.func @transform_1(%arg0: i32) -> (i32, i32) {
    %c0_i32 = arith.constant 0 : i32
    %c0_i32_0 = arith.constant 0 : i32
    %c0_i32_1 = arith.constant 0 : i32
    return %c0_i32, %c0_i32_0 : i32, i32
  }
  func.func @transform_2(%arg0: i32) -> (i32, i32) {
    %c0_i32 = arith.constant 0 : i32
    %c0_i32_0 = arith.constant 0 : i32
    %c0_i32_1 = arith.constant 0 : i32
    return %c0_i32, %c0_i32_0 : i32, i32
  }
  func.func @transform_3(%arg0: i32) -> (i32, i32) {
    %c0_i32 = arith.constant 0 : i32
    %c0_i32_0 = arith.constant 0 : i32
    %c0_i32_1 = arith.constant 0 : i32
    return %c0_i32, %c0_i32_0 : i32, i32
  }
  func.func @transform_4(%arg0: i32) -> (i32, i32) {
    %c0_i32 = arith.constant 0 : i32
    %c0_i32_0 = arith.constant 0 : i32
    %c0_i32_1 = arith.constant 0 : i32
    return %c0_i32, %c0_i32_0 : i32, i32
  }
  func.func @transform_5(%arg0: i32) -> (i32, i32) {
    %c0_i32 = arith.constant 0 : i32
    %c0_i32_0 = arith.constant 0 : i32
    %c0_i32_1 = arith.constant 0 : i32
    return %c0_i32, %c0_i32_0 : i32, i32
  }
  func.func @transform_6(%arg0: i32) -> (i32, i32) {
    %c0_i32 = arith.constant 0 : i32
    %c0_i32_0 = arith.constant 0 : i32
    %c0_i32_1 = arith.constant 0 : i32
    return %c0_i32, %c0_i32_0 : i32, i32
  }
  func.func @transform_7(%arg0: i32) -> (i32, i32) {
    %c0_i32 = arith.constant 0 : i32
    %c0_i32_0 = arith.constant 0 : i32
    return %arg0, %c0_i32 : i32, i32
  }
}

</mosaic_0001>

<llo_original>
// kernel: net_forward.3
$region0: #{net_forward.3}
  #allocation0 [shape = 'u32[]', space=smem, size = 0x4, offset = 0x4, fixed_abs, tag = 'smem constant byte address 0x4 - core index']
  #allocation1 [shape = 'u32[144,128]{1,0:T(1,128)}', space=vmem, size = 0x12000, scoped, tag = 'internal scratch']
  %s0 = inlined_call_operand.vmem [shape: bf16[1568,128], index: 0, kind: input, shape index: {}]
  %s1 = inlined_call_operand.vmem [shape: bf16[128,6], index: 1, kind: input, shape index: {}]
  %s2 = inlined_call_operand.vmem [shape: f32[1,6], index: 2, kind: input, shape index: {}]
  %s3 = inlined_call_operand.vmem [shape: f32[1568,6], index: 3, kind: output, shape index: {}]
  %s4 = sld [smem:[#allocation0]]
  $region93: #{net_forward.3} parent=0
    _
  %s6 = ssub.s32 1, %s4
  %s7 = scalar_select 0, %s6, %s4
  $region1: #{net_forward.3} parent=0
    #allocation2 [shape = 'u8[524288]{0}', space=vmem, size = 0x80000, scoped, tag = 'output window, operand 0']
    loop: start=0, step=1, limit=6
    $region2: #{net_forward.3} parent=1 // loop_pre_header
      _
    $region3: #{net_forward.3} parent=1 // loop_header
      %s9 = sphi 0, %s13
      %p10 = scmp.ge.s32.totalorder %s9, 6
      %s19 = sphi 0, %s21
      %s22 = sphi 0, %s19
      %s23 = sphi 0, %s22
      %s39 = sphi 0, %s23
      %s43 = sphi 0, %s43
      %s45 = sphi 0, %s43
      %s46 = sphi 0, %s45
      %s60 = sphi 0, %s46
      %s64 = sphi 0, %s64
      %s66 = sphi 0, %s64
      %s67 = sphi 0, %s66
      %s81 = sphi 0, %s67
      %s87 = sphi 0, %s89
      %s90 = sphi 0, %s87
      %s91 = sphi 0, %s90
      %s107 = sphi 0, %s91
    $region4: #{net_forward.3} parent=1 // loop_header_branch
      %12 = sbr.rel (%p10) target = $region8
    $region5: #{net_forward.3} parent=1 // loop_body
      %s14 = ssub.s32 %s9, 1
      %s15 = ssub.s32 %s9, 2
      %s16 = sadd.s32 %s9, 1
      %s17 = ssub.s32 %s9, %s16
      %p18 = scmp.eq.s32.totalorder %s17, 0
      %s20 = sadd.s32 %s19, 1
      %s21 = scalar_select %p18, %s19, %s20
      %p24 = pneg %p18
      %p25 = scmp.eq.s32.totalorder %s9, 3
      %p26 = por %p24, %p25
      %p27 = scmp.ne.s32.totalorder %s19, %s22
      %p28 = scmp.eq.s32.totalorder %s9, 0
      %p29 = por %p27, %p28
      %p30 = scmp.ne.s32.totalorder %s19, %s22
      %p31 = scmp.eq.s32.totalorder %s14, 3
      %p32 = por %p30, %p31
      %p33 = scmp.ne.s32.totalorder %s22, %s23
      %p34 = scmp.eq.s32.totalorder %s14, 0
      %p35 = por %p33, %p34
      %p36 = scmp.ne.s32.totalorder %s22, %s23
      %p37 = scmp.eq.s32.totalorder %s15, 3
      %p38 = por %p36, %p37
      %p40 = scmp.ne.s32.totalorder %s23, %s39
      %p41 = scmp.eq.s32.totalorder %s15, 0
      %p42 = por %p40, %p41
      %s44 = sadd.s32 %s43, 1
      %p47 = scmp.eq.s32.totalorder %s9, 3
      %p48 = scmp.ne.s32.totalorder %s43, %s45
      %p49 = scmp.eq.s32.totalorder %s9, 0
      %p50 = por %p48, %p49
      %p51 = scmp.ne.s32.totalorder %s43, %s45
      %p52 = scmp.eq.s32.totalorder %s14, 3
      %p53 = por %p51, %p52
      %p54 = scmp.ne.s32.totalorder %s45, %s46
      %p55 = scmp.eq.s32.totalorder %s14, 0
      %p56 = por %p54, %p55
      %p57 = scmp.ne.s32.totalorder %s45, %s46
      %p58 = scmp.eq.s32.totalorder %s15, 3
      %p59 = por %p57, %p58
      %p61 = scmp.ne.s32.totalorder %s46, %s60
      %p62 = scmp.eq.s32.totalorder %s15, 0
      %p63 = por %p61, %p62
      %s65 = sadd.s32 %s64, 1
      %p68 = scmp.eq.s32.totalorder %s9, 3
      %p69 = scmp.ne.s32.totalorder %s64, %s66
      %p70 = scmp.eq.s32.totalorder %s9, 0
      %p71 = por %p69, %p70
      %p72 = scmp.ne.s32.totalorder %s64, %s66
      %p73 = scmp.eq.s32.totalorder %s14, 3
      %p74 = por %p72, %p73
      %p75 = scmp.ne.s32.totalorder %s66, %s67
      %p76 = scmp.eq.s32.totalorder %s14, 0
      %p77 = por %p75, %p76
      %p78 = scmp.ne.s32.totalorder %s66, %s67
      %p79 = scmp.eq.s32.totalorder %s15, 3
      %p80 = por %p78, %p79
      %p82 = scmp.ne.s32.totalorder %s67, %s81
      %p83 = scmp.eq.s32.totalorder %s15, 0
      %p84 = por %p82, %p83
      %s85 = ssub.s32 %s9, %s16
      %p86 = scmp.eq.s32.totalorder %s85, 0
      %s88 = sadd.s32 %s87, 1
      %s89 = scalar_select %p86, %s87, %s88
      %p92 = pneg %p86
      %p93 = scmp.eq.s32.totalorder %s9, 3
      %p94 = por %p92, %p93
      %p95 = scmp.ne.s32.totalorder %s87, %s90
      %p96 = scmp.eq.s32.totalorder %s9, 0
      %p97 = por %p95, %p96
      %p98 = scmp.ne.s32.totalorder %s87, %s90
      %p99 = scmp.eq.s32.totalorder %s14, 3
      %p100 = por %p98, %p99
      %p101 = scmp.ne.s32.totalorder %s90, %s91
      %p102 = scmp.eq.s32.totalorder %s14, 0
      %p103 = por %p101, %p102
      %p104 = scmp.ne.s32.totalorder %s90, %s91
      %p105 = scmp.eq.s32.totalorder %s15, 3
      %p106 = por %p104, %p105
      %p108 = scmp.ne.s32.totalorder %s91, %s107
      %p109 = scmp.eq.s32.totalorder %s15, 0
      %p110 = por %p108, %p109
      %p111 = scmp.le.s32.totalorder 1, %s9
      %p112 = scmp.lt.s32.totalorder %s9, 5
      %p113 = pnand %p111, %p112
      %p114 = pneg %p113
      // Predicated region
      $region9: #{net_forward.3} parent=5 // pred_check
        _
      $region10: #{net_forward.3} parent=5 // pred_check_branch
        %116 = sbr.rel (%p113) target = $region12
      $region11: #{net_forward.3} parent=5 // pred_region
        %s117 = ssub.s32 %s9, 1
        // Predicated region
        $region13: #{net_forward.3} parent=11 // pred_check
          %p118 = pneg %p56
        $region14: #{net_forward.3} parent=11 // pred_check_branch
          %120 = sbr.rel (%p118) target = $region16
        $region15: #{net_forward.3} parent=11 // pred_region
          _
        $region16: #{net_forward.3} parent=11 // pred_fallthru
          _
        // Predicated region
        $region17: #{net_forward.3} parent=11 // pred_check
          %p121 = pneg %p77
        $region18: #{net_forward.3} parent=11 // pred_check_branch
          %123 = sbr.rel (%p121) target = $region20
        $region19: #{net_forward.3} parent=11 // pred_region
          _
        $region20: #{net_forward.3} parent=11 // pred_fallthru
          _
      $region12: #{net_forward.3} parent=5 // pred_fallthru
        _
      %p124 = scmp.lt.s32.totalorder %s9, 4
      // Predicated region
      $region21: #{net_forward.3} parent=5 // pred_check
        %p125 = pneg %p124
      $region22: #{net_forward.3} parent=5 // pred_check_branch
        %127 = sbr.rel (%p125) target = $region24
      $region23: #{net_forward.3} parent=5 // pred_region
        // Predicated region
        $region25: #{net_forward.3} parent=23 // pred_check
          %p128 = pneg %p29
        $region26: #{net_forward.3} parent=23 // pred_check_branch
          %130 = sbr.rel (%p128) target = $region28
        $region27: #{net_forward.3} parent=23 // pred_region
          %s131 = smul.u32 64, %s9
          %s132 = ssub.s32 196, %s131
          %p133 = scmp.lt.s32.totalorder %s132, 64
          %s134 = scalar_select %p133, %s132, 64
          %s135 = smul.u32 64, %s134
          %p136 = scmp.lt.s32.totalorder %s131, 195
          %s137 = scalar_select %p136, %s131, 195
          %s138 = smul.addr %s137, 4
          %s139 = scalar_lea.vmem %s0, %s138
          %s140 = smul.u32 64, %s9
          %s141 = ssub.s32 196, %s140
          %p142 = scmp.lt.s32.totalorder %s141, 64
          %s143 = scalar_select %p142, %s141, 64
          %s144 = smul.u32 64, %s143
        $region28: #{net_forward.3} parent=23 // pred_fallthru
          _
      $region24: #{net_forward.3} parent=5 // pred_fallthru
        _
      %p145 = scmp.le.s32.totalorder 1, %s9
      %p146 = scmp.lt.s32.totalorder %s9, 5
      %p147 = pnand %p145, %p146
      %p148 = pneg %p147
      // Predicated region
      $region29: #{net_forward.3} parent=5 // pred_check
        _
      $region30: #{net_forward.3} parent=5 // pred_check_branch
        %150 = sbr.rel (%p147) target = $region32
      $region31: #{net_forward.3} parent=5 // pred_region
        %s151 = ssub.s32 %s9, 1
        %s152 = smul.u32 64, %s14
        %s153 = ssub.s32 196, %s152
        %p154 = scmp.lt.s32.totalorder %s153, 64
        %s155 = scalar_select %p154, %s153, 64
        %s156 = smul.u32 64, %s155
        %p157 = scmp.lt.s32.totalorder %s152, 195
        %s158 = scalar_select %p157, %s152, 195
        %s159 = smul.addr %s158, 4
        %s160 = scalar_lea.vmem %s0, %s159
        %p161 = pneg %p35
        %p162 = pneg %p32
        %p163 = pneg %p56
        %p164 = pneg %p53
        %p165 = pneg %p77
        %p166 = pneg %p74
        %p167 = pneg %p103
        %p168 = pneg %p100
        %s169 = sand.u32 %s90, 1
        %s170 = sand.u32 %s90, 1
        %s171 = smul.addr %s170, 512
        %s172 = scalar_lea.vmem [#allocation2], %s171
        %s173 = smul.u32 64, %s14
        %s174 = ssub.s32 196, %s173
        %p175 = scmp.lt.s32.totalorder %s174, 64
        %s176 = scalar_select %p175, %s174, 64
        %s177 = smul.u32 64, %s176
        %p178 = scmp.lt.s32.totalorder %s173, 195
        %s179 = scalar_select %p178, %s173, 195
        %s180 = smul.addr %s179, 4
        %s181 = scalar_lea.vmem %s0, %s180
        %s182 = smul.u32 64, %s14
        %s183 = ssub.s32 196, %s182
        %p184 = scmp.lt.s32.totalorder %s183, 64
        %s185 = scalar_select %p184, %s183, 64
        %s186 = smul.u32 64, %s185
        %s187 = smul.u32 64, %s14
        %s188 = ssub.s32 196, %s187
        %p189 = scmp.lt.s32.totalorder %s188, 64
        %s190 = scalar_select %p189, %s188, 64
        %s191 = smul.u32 128, %s190
        %v193 = vld [vmem:[%s181] sm:$0xf]
        %v194 = vld [vmem:[%s181 + $0x4] sm:$0xf]
        %v195 = vld [vmem:[%s181 + $0x8] sm:$0xf]
        %v196 = vld [vmem:[%s181 + $0xc] sm:$0xf]
        %v197 = vld [vmem:[%s181 + $0x10] sm:$0xf]
        %v198 = vld [vmem:[%s181 + $0x14] sm:$0xf]
        %v199 = vld [vmem:[%s181 + $0x18] sm:$0xf]
        %v200 = vld [vmem:[%s181 + $0x1c] sm:$0xf]
        %v201 = vld [vmem:[%s181 + $0x20] sm:$0xf]
        %v202 = vld [vmem:[%s181 + $0x24] sm:$0xf]
        %v203 = vld [vmem:[%s181 + $0x28] sm:$0xf]
        %v204 = vld [vmem:[%s181 + $0x2c] sm:$0xf]
        %v205 = vld [vmem:[%s181 + $0x30] sm:$0xf]
        %v206 = vld [vmem:[%s181 + $0x34] sm:$0xf]
        %v207 = vld [vmem:[%s181 + $0x38] sm:$0xf]
        %v208 = vld [vmem:[%s181 + $0x3c] sm:$0xf]
        %v209 = vld [vmem:[%s181 + $0x40] sm:$0xf]
        %v210 = vld [vmem:[%s181 + $0x44] sm:$0xf]
        %v211 = vld [vmem:[%s181 + $0x48] sm:$0xf]
        %v212 = vld [vmem:[%s181 + $0x4c] sm:$0xf]
        %v213 = vld [vmem:[%s181 + $0x50] sm:$0xf]
        %v214 = vld [vmem:[%s181 + $0x54] sm:$0xf]
        %v215 = vld [vmem:[%s181 + $0x58] sm:$0xf]
        %v216 = vld [vmem:[%s181 + $0x5c] sm:$0xf]
        %v217 = vld [vmem:[%s181 + $0x60] sm:$0xf]
        %v218 = vld [vmem:[%s181 + $0x64] sm:$0xf]
        %v219 = vld [vmem:[%s181 + $0x68] sm:$0xf]
        %v220 = vld [vmem:[%s181 + $0x6c] sm:$0xf]
        %v221 = vld [vmem:[%s181 + $0x70] sm:$0xf]
        %v222 = vld [vmem:[%s181 + $0x74] sm:$0xf]
        %v223 = vld [vmem:[%s181 + $0x78] sm:$0xf]
        %v224 = vld [vmem:[%s181 + $0x7c] sm:$0xf]
        %v225 = vld [vmem:[%s181 + $0x80] sm:$0xf]
        %v226 = vld [vmem:[%s181 + $0x84] sm:$0xf]
        %v227 = vld [vmem:[%s181 + $0x88] sm:$0xf]
        %v228 = vld [vmem:[%s181 + $0x8c] sm:$0xf]
        %v229 = vld [vmem:[%s181 + $0x90] sm:$0xf]
        %v230 = vld [vmem:[%s181 + $0x94] sm:$0xf]
        %v231 = vld [vmem:[%s181 + $0x98] sm:$0xf]
        %v232 = vld [vmem:[%s181 + $0x9c] sm:$0xf]
        %v233 = vld [vmem:[%s181 + $0xa0] sm:$0xf]
        %v234 = vld [vmem:[%s181 + $0xa4] sm:$0xf]
        %v235 = vld [vmem:[%s181 + $0xa8] sm:$0xf]
        %v236 = vld [vmem:[%s181 + $0xac] sm:$0xf]
        %v237 = vld [vmem:[%s181 + $0xb0] sm:$0xf]
        %v238 = vld [vmem:[%s181 + $0xb4] sm:$0xf]
        %v239 = vld [vmem:[%s181 + $0xb8] sm:$0xf]
        %v240 = vld [vmem:[%s181 + $0xbc] sm:$0xf]
        %v241 = vld [vmem:[%s181 + $0xc0] sm:$0xf]
        %v242 = vld [vmem:[%s181 + $0xc4] sm:$0xf]
        %v243 = vld [vmem:[%s181 + $0xc8] sm:$0xf]
        %v244 = vld [vmem:[%s181 + $0xcc] sm:$0xf]
        %v245 = vld [vmem:[%s181 + $0xd0] sm:$0xf]
        %v246 = vld [vmem:[%s181 + $0xd4] sm:$0xf]
        %v247 = vld [vmem:[%s181 + $0xd8] sm:$0xf]
        %v248 = vld [vmem:[%s181 + $0xdc] sm:$0xf]
        %v249 = vld [vmem:[%s181 + $0xe0] sm:$0xf]
        %v250 = vld [vmem:[%s181 + $0xe4] sm:$0xf]
        %v251 = vld [vmem:[%s181 + $0xe8] sm:$0xf]
        %v252 = vld [vmem:[%s181 + $0xec] sm:$0xf]
        %v253 = vld [vmem:[%s181 + $0xf0] sm:$0xf]
        %v254 = vld [vmem:[%s181 + $0xf4] sm:$0xf]
        %v255 = vld [vmem:[%s181 + $0xf8] sm:$0xf]
        %v256 = vld [vmem:[%s181 + $0xfc] sm:$0xf]
        %v257 = vld [vmem:[%s1] sm:$0xf]
        %v258 = vld [vmem:[%s1 + $0x4] sm:$0xf]
        %v259 = vld [vmem:[%s1 + $0x8] sm:$0xf]
        %v260 = vld [vmem:[%s1 + $0xc] sm:$0xf]
        %v261 = vld [vmem:[%s1 + $0x10] sm:$0xf]
        %v262 = vld [vmem:[%s1 + $0x14] sm:$0xf]
        %v263 = vld [vmem:[%s1 + $0x18] sm:$0xf]
        %v264 = vld [vmem:[%s1 + $0x1c] sm:$0xf]
        %v265 = vld [vmem:[%s1 + $0x20] sm:$0xf]
        %v266 = vld [vmem:[%s1 + $0x24] sm:$0xf]
        %v267 = vld [vmem:[%s1 + $0x28] sm:$0xf]
        %v268 = vld [vmem:[%s1 + $0x2c] sm:$0xf]
        %v269 = vld [vmem:[%s1 + $0x30] sm:$0xf]
        %v270 = vld [vmem:[%s1 + $0x34] sm:$0xf]
        %v271 = vld [vmem:[%s1 + $0x38] sm:$0xf]
        %v272 = vld [vmem:[%s1 + $0x3c] sm:$0xf]
        %v273 = vld [vmem:[%s2] sm:$0x1]
        %v275 = vlaneseq
        %v276 = vshrl.u32 %v275, 7
        %v277 = vsub.s32 0, %v276
        %v278 = vrot.slane %v273, %v277
        %v344 = vunpack.c.l.b16 %v193
        %v345 = vunpack.c.l.b16 %v194
        %v346 = vunpack.c.l.b16 %v195
        %v347 = vunpack.c.l.b16 %v196
        %v348 = vunpack.c.l.b16 %v197
        %v349 = vunpack.c.l.b16 %v198
        %v350 = vunpack.c.l.b16 %v199
        %v351 = vunpack.c.l.b16 %v200
        %v352 = vunpack.c.l.b16 %v201
        %v353 = vunpack.c.l.b16 %v202
        %v354 = vunpack.c.l.b16 %v203
        %v355 = vunpack.c.l.b16 %v204
        %v356 = vunpack.c.l.b16 %v205
        %v357 = vunpack.c.l.b16 %v206
        %v358 = vunpack.c.l.b16 %v207
        %v359 = vunpack.c.l.b16 %v208
        %v360 = vunpack.c.l.b16 %v209
        %v361 = vunpack.c.l.b16 %v210
        %v362 = vunpack.c.l.b16 %v211
        %v363 = vunpack.c.l.b16 %v212
        %v364 = vunpack.c.l.b16 %v213
        %v365 = vunpack.c.l.b16 %v214
        %v366 = vunpack.c.l.b16 %v215
        %v367 = vunpack.c.l.b16 %v216
        %v368 = vunpack.c.l.b16 %v217
        %v369 = vunpack.c.l.b16 %v218
        %v370 = vunpack.c.l.b16 %v219
        %v371 = vunpack.c.l.b16 %v220
        %v372 = vunpack.c.l.b16 %v221
        %v373 = vunpack.c.l.b16 %v222
        %v374 = vunpack.c.l.b16 %v223
        %v375 = vunpack.c.l.b16 %v224
        %v376 = vunpack.c.l.b16 %v225
        %v377 = vunpack.c.l.b16 %v226
        %v378 = vunpack.c.l.b16 %v227
        %v379 = vunpack.c.l.b16 %v228
        %v380 = vunpack.c.l.b16 %v229
        %v381 = vunpack.c.l.b16 %v230
        %v382 = vunpack.c.l.b16 %v231
        %v383 = vunpack.c.l.b16 %v232
        %v384 = vunpack.c.l.b16 %v233
        %v385 = vunpack.c.l.b16 %v234
        %v386 = vunpack.c.l.b16 %v235
        %v387 = vunpack.c.l.b16 %v236
        %v388 = vunpack.c.l.b16 %v237
        %v389 = vunpack.c.l.b16 %v238
        %v390 = vunpack.c.l.b16 %v239
        %v391 = vunpack.c.l.b16 %v240
        %v392 = vunpack.c.l.b16 %v241
        %v393 = vunpack.c.l.b16 %v242
        %v394 = vunpack.c.l.b16 %v243
        %v395 = vunpack.c.l.b16 %v244
        %v396 = vunpack.c.l.b16 %v245
        %v397 = vunpack.c.l.b16 %v246
        %v398 = vunpack.c.l.b16 %v247
        %v399 = vunpack.c.l.b16 %v248
        %v400 = vunpack.c.l.b16 %v249
        %v401 = vunpack.c.l.b16 %v250
        %v402 = vunpack.c.l.b16 %v251
        %v403 = vunpack.c.l.b16 %v252
        %v404 = vunpack.c.l.b16 %v253
        %v405 = vunpack.c.l.b16 %v254
        %v406 = vunpack.c.l.b16 %v255
        %v407 = vunpack.c.l.b16 %v256
        %v408 = vpack.c.b16 %v345, %v344
        %v409 = vpack.c.b16 %v347, %v346
        %v410 = vpack.c.b16 %v349, %v348
        %v411 = vpack.c.b16 %v351, %v350
        %v412 = vpack.c.b16 %v353, %v352
        %v413 = vpack.c.b16 %v355, %v354
        %v414 = vpack.c.b16 %v357, %v356
        %v415 = vpack.c.b16 %v359, %v358
        %v416 = vpack.c.b16 %v361, %v360
        %v417 = vpack.c.b16 %v363, %v362
        %v418 = vpack.c.b16 %v365, %v364
        %v419 = vpack.c.b16 %v367, %v366
        %v420 = vpack.c.b16 %v369, %v368
        %v421 = vpack.c.b16 %v371, %v370
        %v422 = vpack.c.b16 %v373, %v372
        %v423 = vpack.c.b16 %v375, %v374
        %v424 = vpack.c.b16 %v377, %v376
        %v425 = vpack.c.b16 %v379, %v378
        %v426 = vpack.c.b16 %v381, %v380
        %v427 = vpack.c.b16 %v383, %v382
        %v428 = vpack.c.b16 %v385, %v384
        %v429 = vpack.c.b16 %v387, %v386
        %v430 = vpack.c.b16 %v389, %v388
        %v431 = vpack.c.b16 %v391, %v390
        %v432 = vpack.c.b16 %v393, %v392
        %v433 = vpack.c.b16 %v395, %v394
        %v434 = vpack.c.b16 %v397, %v396
        %v435 = vpack.c.b16 %v399, %v398
        %v436 = vpack.c.b16 %v401, %v400
        %v437 = vpack.c.b16 %v403, %v402
        %v438 = vpack.c.b16 %v405, %v404
        %v439 = vpack.c.b16 %v407, %v406
        %v488 = vunpack.c.l.b16 %v257
        %v489 = vunpack.c.l.b16 %v258
        %v490 = vunpack.c.l.b16 %v259
        %v491 = vunpack.c.l.b16 %v260
        %v492 = vunpack.c.l.b16 %v261
        %v493 = vunpack.c.l.b16 %v262
        %v494 = vunpack.c.l.b16 %v263
        %v495 = vunpack.c.l.b16 %v264
        %v496 = vunpack.c.l.b16 %v265
        %v497 = vunpack.c.l.b16 %v266
        %v498 = vunpack.c.l.b16 %v267
        %v499 = vunpack.c.l.b16 %v268
        %v500 = vunpack.c.l.b16 %v269
        %v501 = vunpack.c.l.b16 %v270
        %v502 = vunpack.c.l.b16 %v271
        %v503 = vunpack.c.l.b16 %v272
        %v504 = vpack.c.b16 %v489, %v488
        %v505 = vpack.c.b16 %v491, %v490
        %v506 = vpack.c.b16 %v493, %v492
        %v507 = vpack.c.b16 %v495, %v494
        %v508 = vpack.c.b16 %v497, %v496
        %v509 = vpack.c.b16 %v499, %v498
        %v510 = vpack.c.b16 %v501, %v500
        %v511 = vpack.c.b16 %v503, %v502
        %520 = vmatprep.subr.bf16.mxu0 0
        %521 = vmatpush1.bf16.msra.mxu0 %v511
        %522 = vmatprep.subr.bf16.mxu0 0
        %523 = vmatpush1.bf16.msra.mxu0 %v510
        %524 = vmatprep.subr.bf16.mxu0 0
        %525 = vmatpush1.bf16.msra.mxu0 %v509
        %526 = vmatprep.subr.bf16.mxu0 0
        %527 = vmatpush1.bf16.msra.mxu0 %v508
        %528 = vmatprep.subr.bf16.mxu0 0
        %529 = vmatpush1.bf16.msra.mxu0 %v507
        %530 = vmatprep.subr.bf16.mxu0 0
        %531 = vmatpush1.bf16.msra.mxu0 %v506
        %532 = vmatprep.subr.bf16.mxu0 0
        %533 = vmatpush1.bf16.msra.mxu0 %v505
        %534 = vmatprep.subr.bf16.mxu0 0
        %535 = vmatpush1.bf16.msra.mxu0 %v504
        %536 = vmatprep.subr.bf16.mxu0 0
        %537 = vmatpush2.bf16.msra.mxu0 0
        %538 = vmatprep.subr.bf16.mxu0 0
        %539 = vmatpush2.bf16.msra.mxu0 0
        %540 = vmatprep.subr.bf16.mxu0 0
        %541 = vmatpush2.bf16.msra.mxu0 0
        %542 = vmatprep.subr.bf16.mxu0 0
        %543 = vmatpush2.bf16.msra.mxu0 0
        %544 = vmatprep.subr.bf16.mxu0 0
        %545 = vmatpush2.bf16.msra.mxu0 0
        %546 = vmatprep.subr.bf16.mxu0 0
        %547 = vmatpush2.bf16.msra.mxu0 0
        %548 = vmatprep.subr.bf16.mxu0 0
        %549 = vmatpush2.bf16.msra.mxu0 0
        %550 = vmatprep.subr.bf16.mxu0 0
        %551 = vmatpush2.bf16.msra.mxu0 0
        %552 = vmatprep.mubr.bf16.mxu0 0
        %553 = vmatmul.mubr.bf16.gmra.mxu0 %v408
        %v554 = vpop.f32.mrf.mxu0
        %v555 = vadd.f32 %v278, %v554
        %v556 = vpop.f32.mrf.mxu0
        %v557 = vpop.f32.mrf.mxu0
        %v558 = vadd.f32 %v278, %v557
        %v559 = vpop.f32.mrf.mxu0
        %560 = vmatprep.mubr.bf16.mxu0 0
        %561 = vmatmul.mubr.bf16.gmra.mxu0 %v409
        %v562 = vpop.f32.mrf.mxu0
        %v563 = vadd.f32 %v278, %v562
        %v564 = vpop.f32.mrf.mxu0
        %v565 = vpop.f32.mrf.mxu0
        %v566 = vadd.f32 %v278, %v565
        %v567 = vpop.f32.mrf.mxu0
        %568 = vmatprep.mubr.bf16.mxu0 0
        %569 = vmatmul.mubr.bf16.gmra.mxu0 %v410
        %v570 = vpop.f32.mrf.mxu0
        %v571 = vadd.f32 %v278, %v570
        %v572 = vpop.f32.mrf.mxu0
        %v573 = vpop.f32.mrf.mxu0
        %v574 = vadd.f32 %v278, %v573
        %v575 = vpop.f32.mrf.mxu0
        %576 = vmatprep.mubr.bf16.mxu0 0
        %577 = vmatmul.mubr.bf16.gmra.mxu0 %v411
        %v578 = vpop.f32.mrf.mxu0
        %v579 = vadd.f32 %v278, %v578
        %v580 = vpop.f32.mrf.mxu0
        %v581 = vpop.f32.mrf.mxu0
        %v582 = vadd.f32 %v278, %v581
        %v583 = vpop.f32.mrf.mxu0
        %584 = vmatprep.mubr.bf16.mxu0 0
        %585 = vmatmul.mubr.bf16.gmra.mxu0 %v412
        %v586 = vpop.f32.mrf.mxu0
        %v587 = vadd.f32 %v278, %v586
        %v588 = vpop.f32.mrf.mxu0
        %v589 = vpop.f32.mrf.mxu0
        %v590 = vadd.f32 %v278, %v589
        %v591 = vpop.f32.mrf.mxu0
        %592 = vmatprep.mubr.bf16.mxu0 0
        %593 = vmatmul.mubr.bf16.gmra.mxu0 %v413
        %v594 = vpop.f32.mrf.mxu0
        %v595 = vadd.f32 %v278, %v594
        %v596 = vpop.f32.mrf.mxu0
        %v597 = vpop.f32.mrf.mxu0
        %v598 = vadd.f32 %v278, %v597
        %v599 = vpop.f32.mrf.mxu0
        %600 = vmatprep.mubr.bf16.mxu0 0
        %601 = vmatmul.mubr.bf16.gmra.mxu0 %v414
        %v602 = vpop.f32.mrf.mxu0
        %v603 = vadd.f32 %v278, %v602
        %v604 = vpop.f32.mrf.mxu0
        %v605 = vpop.f32.mrf.mxu0
        %v606 = vadd.f32 %v278, %v605
        %v607 = vpop.f32.mrf.mxu0
        %608 = vmatprep.mubr.bf16.mxu0 0
        %609 = vmatmul.mubr.bf16.gmra.mxu0 %v415
        %v610 = vpop.f32.mrf.mxu0
        %v611 = vadd.f32 %v278, %v610
        %v612 = vpop.f32.mrf.mxu0
        %v613 = vpop.f32.mrf.mxu0
        %v614 = vadd.f32 %v278, %v613
        %v615 = vpop.f32.mrf.mxu0
        %616 = vmatprep.mubr.bf16.mxu0 0
        %617 = vmatmul.mubr.bf16.gmra.mxu0 %v416
        %v618 = vpop.f32.mrf.mxu0
        %v619 = vadd.f32 %v278, %v618
        %v620 = vpop.f32.mrf.mxu0
        %v621 = vpop.f32.mrf.mxu0
        %v622 = vadd.f32 %v278, %v621
        %v623 = vpop.f32.mrf.mxu0
        %624 = vmatprep.mubr.bf16.mxu0 0
        %625 = vmatmul.mubr.bf16.gmra.mxu0 %v417
        %v626 = vpop.f32.mrf.mxu0
        %v627 = vadd.f32 %v278, %v626
        %v628 = vpop.f32.mrf.mxu0
        %v629 = vpop.f32.mrf.mxu0
        %v630 = vadd.f32 %v278, %v629
        %v631 = vpop.f32.mrf.mxu0
        %632 = vmatprep.mubr.bf16.mxu0 0
        %633 = vmatmul.mubr.bf16.gmra.mxu0 %v418
        %v634 = vpop.f32.mrf.mxu0
        %v635 = vadd.f32 %v278, %v634
        %v636 = vpop.f32.mrf.mxu0
        %v637 = vpop.f32.mrf.mxu0
        %v638 = vadd.f32 %v278, %v637
        %v639 = vpop.f32.mrf.mxu0
        %640 = vmatprep.mubr.bf16.mxu0 0
        %641 = vmatmul.mubr.bf16.gmra.mxu0 %v419
        %v642 = vpop.f32.mrf.mxu0
        %v643 = vadd.f32 %v278, %v642
        %v644 = vpop.f32.mrf.mxu0
        %v645 = vpop.f32.mrf.mxu0
        %v646 = vadd.f32 %v278, %v645
        %v647 = vpop.f32.mrf.mxu0
        %648 = vmatprep.mubr.bf16.mxu0 0
        %649 = vmatmul.mubr.bf16.gmra.mxu0 %v420
        %v650 = vpop.f32.mrf.mxu0
        %v651 = vadd.f32 %v278, %v650
        %v652 = vpop.f32.mrf.mxu0
        %v653 = vpop.f32.mrf.mxu0
        %v654 = vadd.f32 %v278, %v653
        %v655 = vpop.f32.mrf.mxu0
        %656 = vmatprep.mubr.bf16.mxu0 0
        %657 = vmatmul.mubr.bf16.gmra.mxu0 %v421
        %v658 = vpop.f32.mrf.mxu0
        %v659 = vadd.f32 %v278, %v658
        %v660 = vpop.f32.mrf.mxu0
        %v661 = vpop.f32.mrf.mxu0
        %v662 = vadd.f32 %v278, %v661
        %v663 = vpop.f32.mrf.mxu0
        %664 = vmatprep.mubr.bf16.mxu0 0
        %665 = vmatmul.mubr.bf16.gmra.mxu0 %v422
        %v666 = vpop.f32.mrf.mxu0
        %v667 = vadd.f32 %v278, %v666
        %v668 = vpop.f32.mrf.mxu0
        %v669 = vpop.f32.mrf.mxu0
        %v670 = vadd.f32 %v278, %v669
        %v671 = vpop.f32.mrf.mxu0
        %672 = vmatprep.mubr.bf16.mxu0 0
        %673 = vmatmul.mubr.bf16.gmra.mxu0 %v423
        %v674 = vpop.f32.mrf.mxu0
        %v675 = vadd.f32 %v278, %v674
        %v676 = vpop.f32.mrf.mxu0
        %v677 = vpop.f32.mrf.mxu0
        %v678 = vadd.f32 %v278, %v677
        %v679 = vpop.f32.mrf.mxu0
        %680 = vmatprep.mubr.bf16.mxu0 0
        %681 = vmatmul.mubr.bf16.gmra.mxu0 %v424
        %v682 = vpop.f32.mrf.mxu0
        %v683 = vadd.f32 %v278, %v682
        %v684 = vpop.f32.mrf.mxu0
        %v685 = vpop.f32.mrf.mxu0
        %v686 = vadd.f32 %v278, %v685
        %v687 = vpop.f32.mrf.mxu0
        %688 = vmatprep.mubr.bf16.mxu0 0
        %689 = vmatmul.mubr.bf16.gmra.mxu0 %v425
        %v690 = vpop.f32.mrf.mxu0
        %v691 = vadd.f32 %v278, %v690
        %v692 = vpop.f32.mrf.mxu0
        %v693 = vpop.f32.mrf.mxu0
        %v694 = vadd.f32 %v278, %v693
        %v695 = vpop.f32.mrf.mxu0
        %696 = vmatprep.mubr.bf16.mxu0 0
        %697 = vmatmul.mubr.bf16.gmra.mxu0 %v426
        %v698 = vpop.f32.mrf.mxu0
        %v699 = vadd.f32 %v278, %v698
        %v700 = vpop.f32.mrf.mxu0
        %v701 = vpop.f32.mrf.mxu0
        %v702 = vadd.f32 %v278, %v701
        %v703 = vpop.f32.mrf.mxu0
        %704 = vmatprep.mubr.bf16.mxu0 0
        %705 = vmatmul.mubr.bf16.gmra.mxu0 %v427
        %v706 = vpop.f32.mrf.mxu0
        %v707 = vadd.f32 %v278, %v706
        %v708 = vpop.f32.mrf.mxu0
        %v709 = vpop.f32.mrf.mxu0
        %v710 = vadd.f32 %v278, %v709
        %v711 = vpop.f32.mrf.mxu0
        %712 = vmatprep.mubr.bf16.mxu0 0
        %713 = vmatmul.mubr.bf16.gmra.mxu0 %v428
        %v714 = vpop.f32.mrf.mxu0
        %v715 = vadd.f32 %v278, %v714
        %v716 = vpop.f32.mrf.mxu0
        %v717 = vpop.f32.mrf.mxu0
        %v718 = vadd.f32 %v278, %v717
        %v719 = vpop.f32.mrf.mxu0
        %720 = vmatprep.mubr.bf16.mxu0 0
        %721 = vmatmul.mubr.bf16.gmra.mxu0 %v429
        %v722 = vpop.f32.mrf.mxu0
        %v723 = vadd.f32 %v278, %v722
        %v724 = vpop.f32.mrf.mxu0
        %v725 = vpop.f32.mrf.mxu0
        %v726 = vadd.f32 %v278, %v725
        %v727 = vpop.f32.mrf.mxu0
        %728 = vmatprep.mubr.bf16.mxu0 0
        %729 = vmatmul.mubr.bf16.gmra.mxu0 %v430
        %v730 = vpop.f32.mrf.mxu0
        %v731 = vadd.f32 %v278, %v730
        %v732 = vpop.f32.mrf.mxu0
        %v733 = vpop.f32.mrf.mxu0
        %v734 = vadd.f32 %v278, %v733
        %v735 = vpop.f32.mrf.mxu0
        %736 = vmatprep.mubr.bf16.mxu0 0
        %737 = vmatmul.mubr.bf16.gmra.mxu0 %v431
        %v738 = vpop.f32.mrf.mxu0
        %v739 = vadd.f32 %v278, %v738
        %v740 = vpop.f32.mrf.mxu0
        %v741 = vpop.f32.mrf.mxu0
        %v742 = vadd.f32 %v278, %v741
        %v743 = vpop.f32.mrf.mxu0
        %744 = vmatprep.mubr.bf16.mxu0 0
        %745 = vmatmul.mubr.bf16.gmra.mxu0 %v432
        %v746 = vpop.f32.mrf.mxu0
        %v747 = vadd.f32 %v278, %v746
        %v748 = vpop.f32.mrf.mxu0
        %v749 = vpop.f32.mrf.mxu0
        %v750 = vadd.f32 %v278, %v749
        %v751 = vpop.f32.mrf.mxu0
        %752 = vmatprep.mubr.bf16.mxu0 0
        %753 = vmatmul.mubr.bf16.gmra.mxu0 %v433
        %v754 = vpop.f32.mrf.mxu0
        %v755 = vadd.f32 %v278, %v754
        %v756 = vpop.f32.mrf.mxu0
        %v757 = vpop.f32.mrf.mxu0
        %v758 = vadd.f32 %v278, %v757
        %v759 = vpop.f32.mrf.mxu0
        %760 = vmatprep.mubr.bf16.mxu0 0
        %761 = vmatmul.mubr.bf16.gmra.mxu0 %v434
        %v762 = vpop.f32.mrf.mxu0
        %v763 = vadd.f32 %v278, %v762
        %v764 = vpop.f32.mrf.mxu0
        %v765 = vpop.f32.mrf.mxu0
        %v766 = vadd.f32 %v278, %v765
        %v767 = vpop.f32.mrf.mxu0
        %768 = vmatprep.mubr.bf16.mxu0 0
        %769 = vmatmul.mubr.bf16.gmra.mxu0 %v435
        %v770 = vpop.f32.mrf.mxu0
        %v771 = vadd.f32 %v278, %v770
        %v772 = vpop.f32.mrf.mxu0
        %v773 = vpop.f32.mrf.mxu0
        %v774 = vadd.f32 %v278, %v773
        %v775 = vpop.f32.mrf.mxu0
        %776 = vmatprep.mubr.bf16.mxu0 0
        %777 = vmatmul.mubr.bf16.gmra.mxu0 %v436
        %v778 = vpop.f32.mrf.mxu0
        %v779 = vadd.f32 %v278, %v778
        %v780 = vpop.f32.mrf.mxu0
        %v781 = vpop.f32.mrf.mxu0
        %v782 = vadd.f32 %v278, %v781
        %v783 = vpop.f32.mrf.mxu0
        %784 = vmatprep.mubr.bf16.mxu0 0
        %785 = vmatmul.mubr.bf16.gmra.mxu0 %v437
        %v786 = vpop.f32.mrf.mxu0
        %v787 = vadd.f32 %v278, %v786
        %v788 = vpop.f32.mrf.mxu0
        %v789 = vpop.f32.mrf.mxu0
        %v790 = vadd.f32 %v278, %v789
        %v791 = vpop.f32.mrf.mxu0
        %792 = vmatprep.mubr.bf16.mxu0 0
        %793 = vmatmul.mubr.bf16.gmra.mxu0 %v438
        %v794 = vpop.f32.mrf.mxu0
        %v795 = vadd.f32 %v278, %v794
        %v796 = vpop.f32.mrf.mxu0
        %v797 = vpop.f32.mrf.mxu0
        %v798 = vadd.f32 %v278, %v797
        %v799 = vpop.f32.mrf.mxu0
        %800 = vmatprep.mubr.bf16.mxu0 0
        %801 = vmatmul.mubr.bf16.gmra.mxu0 %v439
        %v802 = vpop.f32.mrf.mxu0
        %v803 = vadd.f32 %v278, %v802
        %v804 = vpop.f32.mrf.mxu0
        %v805 = vpop.f32.mrf.mxu0
        %v806 = vadd.f32 %v278, %v805
        %v807 = vpop.f32.mrf.mxu0
        %808 = vdwg.mxu0
        %v809 = vmax.f32 %v555, 0.0
        %v810 = vmax.f32 %v558, 0.0
        %v811 = vmax.f32 %v563, 0.0
        %v812 = vmax.f32 %v566, 0.0
        %v813 = vmax.f32 %v571, 0.0
        %v814 = vmax.f32 %v574, 0.0
        %v815 = vmax.f32 %v579, 0.0
        %v816 = vmax.f32 %v582, 0.0
        %v817 = vmax.f32 %v587, 0.0
        %v818 = vmax.f32 %v590, 0.0
        %v819 = vmax.f32 %v595, 0.0
        %v820 = vmax.f32 %v598, 0.0
        %v821 = vmax.f32 %v603, 0.0
        %v822 = vmax.f32 %v606, 0.0
        %v823 = vmax.f32 %v611, 0.0
        %v824 = vmax.f32 %v614, 0.0
        %v825 = vmax.f32 %v619, 0.0
        %v826 = vmax.f32 %v622, 0.0
        %v827 = vmax.f32 %v627, 0.0
        %v828 = vmax.f32 %v630, 0.0
        %v829 = vmax.f32 %v635, 0.0
        %v830 = vmax.f32 %v638, 0.0
        %v831 = vmax.f32 %v643, 0.0
        %v832 = vmax.f32 %v646, 0.0
        %v833 = vmax.f32 %v651, 0.0
        %v834 = vmax.f32 %v654, 0.0
        %v835 = vmax.f32 %v659, 0.0
        %v836 = vmax.f32 %v662, 0.0
        %v837 = vmax.f32 %v667, 0.0
        %v838 = vmax.f32 %v670, 0.0
        %v839 = vmax.f32 %v675, 0.0
        %v840 = vmax.f32 %v678, 0.0
        %v841 = vmax.f32 %v683, 0.0
        %v842 = vmax.f32 %v686, 0.0
        %v843 = vmax.f32 %v691, 0.0
        %v844 = vmax.f32 %v694, 0.0
        %v845 = vmax.f32 %v699, 0.0
        %v846 = vmax.f32 %v702, 0.0
        %v847 = vmax.f32 %v707, 0.0
        %v848 = vmax.f32 %v710, 0.0
        %v849 = vmax.f32 %v715, 0.0
        %v850 = vmax.f32 %v718, 0.0
        %v851 = vmax.f32 %v723, 0.0
        %v852 = vmax.f32 %v726, 0.0
        %v853 = vmax.f32 %v731, 0.0
        %v854 = vmax.f32 %v734, 0.0
        %v855 = vmax.f32 %v739, 0.0
        %v856 = vmax.f32 %v742, 0.0
        %v857 = vmax.f32 %v747, 0.0
        %v858 = vmax.f32 %v750, 0.0
        %v859 = vmax.f32 %v755, 0.0
        %v860 = vmax.f32 %v758, 0.0
        %v861 = vmax.f32 %v763, 0.0
        %v862 = vmax.f32 %v766, 0.0
        %v863 = vmax.f32 %v771, 0.0
        %v864 = vmax.f32 %v774, 0.0
        %v865 = vmax.f32 %v779, 0.0
        %v866 = vmax.f32 %v782, 0.0
        %v867 = vmax.f32 %v787, 0.0
        %v868 = vmax.f32 %v790, 0.0
        %v869 = vmax.f32 %v795, 0.0
        %v870 = vmax.f32 %v798, 0.0
        %v871 = vmax.f32 %v803, 0.0
        %v872 = vmax.f32 %v806, 0.0
        %vm873 = vcmask 48128
        %874 = vst.msk [vmem:[%s172] sm:$0xff] %vm873, %v809
        %875 = vst.msk [vmem:[%s172 + $0x8] sm:$0xff] %vm873, %v810
        %876 = vst.msk [vmem:[%s172 + $0x10] sm:$0xff] %vm873, %v811
        %877 = vst.msk [vmem:[%s172 + $0x18] sm:$0xff] %vm873, %v812
        %878 = vst.msk [vmem:[%s172 + $0x20] sm:$0xff] %vm873, %v813
        %879 = vst.msk [vmem:[%s172 + $0x28] sm:$0xff] %vm873, %v814
        %880 = vst.msk [vmem:[%s172 + $0x30] sm:$0xff] %vm873, %v815
        %881 = vst.msk [vmem:[%s172 + $0x38] sm:$0xff] %vm873, %v816
        %882 = vst.msk [vmem:[%s172 + $0x40] sm:$0xff] %vm873, %v817
        %883 = vst.msk [vmem:[%s172 + $0x48] sm:$0xff] %vm873, %v818
        %884 = vst.msk [vmem:[%s172 + $0x50] sm:$0xff] %vm873, %v819
        %885 = vst.msk [vmem:[%s172 + $0x58] sm:$0xff] %vm873, %v820
        %886 = vst.msk [vmem:[%s172 + $0x60] sm:$0xff] %vm873, %v821
        %887 = vst.msk [vmem:[%s172 + $0x68] sm:$0xff] %vm873, %v822
        %888 = vst.msk [vmem:[%s172 + $0x70] sm:$0xff] %vm873, %v823
        %889 = vst.msk [vmem:[%s172 + $0x78] sm:$0xff] %vm873, %v824
        %890 = vst.msk [vmem:[%s172 + $0x80] sm:$0xff] %vm873, %v825
        %891 = vst.msk [vmem:[%s172 + $0x88] sm:$0xff] %vm873, %v826
        %892 = vst.msk [vmem:[%s172 + $0x90] sm:$0xff] %vm873, %v827
        %893 = vst.msk [vmem:[%s172 + $0x98] sm:$0xff] %vm873, %v828
        %894 = vst.msk [vmem:[%s172 + $0xa0] sm:$0xff] %vm873, %v829
        %895 = vst.msk [vmem:[%s172 + $0xa8] sm:$0xff] %vm873, %v830
        %896 = vst.msk [vmem:[%s172 + $0xb0] sm:$0xff] %vm873, %v831
        %897 = vst.msk [vmem:[%s172 + $0xb8] sm:$0xff] %vm873, %v832
        %898 = vst.msk [vmem:[%s172 + $0xc0] sm:$0xff] %vm873, %v833
        %899 = vst.msk [vmem:[%s172 + $0xc8] sm:$0xff] %vm873, %v834
        %900 = vst.msk [vmem:[%s172 + $0xd0] sm:$0xff] %vm873, %v835
        %901 = vst.msk [vmem:[%s172 + $0xd8] sm:$0xff] %vm873, %v836
        %902 = vst.msk [vmem:[%s172 + $0xe0] sm:$0xff] %vm873, %v837
        %903 = vst.msk [vmem:[%s172 + $0xe8] sm:$0xff] %vm873, %v838
        %904 = vst.msk [vmem:[%s172 + $0xf0] sm:$0xff] %vm873, %v839
        %905 = vst.msk [vmem:[%s172 + $0xf8] sm:$0xff] %vm873, %v840
        %906 = vst.msk [vmem:[%s172 + $0x100] sm:$0xff] %vm873, %v841
        %907 = vst.msk [vmem:[%s172 + $0x108] sm:$0xff] %vm873, %v842
        %908 = vst.msk [vmem:[%s172 + $0x110] sm:$0xff] %vm873, %v843
        %909 = vst.msk [vmem:[%s172 + $0x118] sm:$0xff] %vm873, %v844
        %910 = vst.msk [vmem:[%s172 + $0x120] sm:$0xff] %vm873, %v845
        %911 = vst.msk [vmem:[%s172 + $0x128] sm:$0xff] %vm873, %v846
        %912 = vst.msk [vmem:[%s172 + $0x130] sm:$0xff] %vm873, %v847
        %913 = vst.msk [vmem:[%s172 + $0x138] sm:$0xff] %vm873, %v848
        %914 = vst.msk [vmem:[%s172 + $0x140] sm:$0xff] %vm873, %v849
        %915 = vst.msk [vmem:[%s172 + $0x148] sm:$0xff] %vm873, %v850
        %916 = vst.msk [vmem:[%s172 + $0x150] sm:$0xff] %vm873, %v851
        %917 = vst.msk [vmem:[%s172 + $0x158] sm:$0xff] %vm873, %v852
        %918 = vst.msk [vmem:[%s172 + $0x160] sm:$0xff] %vm873, %v853
        %919 = vst.msk [vmem:[%s172 + $0x168] sm:$0xff] %vm873, %v854
        %920 = vst.msk [vmem:[%s172 + $0x170] sm:$0xff] %vm873, %v855
        %921 = vst.msk [vmem:[%s172 + $0x178] sm:$0xff] %vm873, %v856
        %922 = vst.msk [vmem:[%s172 + $0x180] sm:$0xff] %vm873, %v857
        %923 = vst.msk [vmem:[%s172 + $0x188] sm:$0xff] %vm873, %v858
        %924 = vst.msk [vmem:[%s172 + $0x190] sm:$0xff] %vm873, %v859
        %925 = vst.msk [vmem:[%s172 + $0x198] sm:$0xff] %vm873, %v860
        %926 = vst.msk [vmem:[%s172 + $0x1a0] sm:$0xff] %vm873, %v861
        %927 = vst.msk [vmem:[%s172 + $0x1a8] sm:$0xff] %vm873, %v862
        %928 = vst.msk [vmem:[%s172 + $0x1b0] sm:$0xff] %vm873, %v863
        %929 = vst.msk [vmem:[%s172 + $0x1b8] sm:$0xff] %vm873, %v864
        %930 = vst.msk [vmem:[%s172 + $0x1c0] sm:$0xff] %vm873, %v865
        %931 = vst.msk [vmem:[%s172 + $0x1c8] sm:$0xff] %vm873, %v866
        %932 = vst.msk [vmem:[%s172 + $0x1d0] sm:$0xff] %vm873, %v867
        %933 = vst.msk [vmem:[%s172 + $0x1d8] sm:$0xff] %vm873, %v868
        %934 = vst.msk [vmem:[%s172 + $0x1e0] sm:$0xff] %vm873, %v869
        %935 = vst.msk [vmem:[%s172 + $0x1e8] sm:$0xff] %vm873, %v870
        %936 = vst.msk [vmem:[%s172 + $0x1f0] sm:$0xff] %vm873, %v871
        %937 = vst.msk [vmem:[%s172 + $0x1f8] sm:$0xff] %vm873, %v872
        %s938 = sand.u32 %s90, 1
        %s939 = sand.u32 %s90, 1
        %s940 = smul.addr %s939, 512
        %s941 = scalar_lea.vmem [#allocation2], %s940
        // Predicated region
        $region33: #{net_forward.3} parent=31 // pred_check
          %p942 = pneg %p100
        $region34: #{net_forward.3} parent=31 // pred_check_branch
          %944 = sbr.rel (%p942) target = $region36
        $region35: #{net_forward.3} parent=31 // pred_region
          %s945 = smul.u32 64, %s14
          %s946 = ssub.s32 196, %s945
          %p947 = scmp.lt.s32.totalorder %s946, 64
          %s948 = scalar_select %p947, %s946, 64
          %s949 = smul.u32 128, %s948
          %p950 = scmp.ne.s32.totalorder 0, %s949
          %s951 = smul.addr %s945, 8
          %s952 = scalar_lea.vmem %s3, %s951
          // Predicated region
          $region37: #{net_forward.3} parent=35 // pred_check
            %p953 = pneg %p950
          $region38: #{net_forward.3} parent=35 // pred_check_branch
            %955 = sbr.rel (%p953) target = $region40
          $region39: #{net_forward.3} parent=35 // pred_region
            // Predicated region
            $region41: #{net_forward.3} parent=39 // pred_check
              _
            $region42: #{net_forward.3} parent=39 // pred_check_branch
              %957 = sbr.rel (0) target = $region44
            $region43: #{net_forward.3} parent=39 // pred_region
              // Predicated region
              $region63: #{net_forward.3} parent=43 // pred_check
                _
              $region64: #{net_forward.3} parent=43 // pred_check_branch
                %1133 = sbr.rel (0) target = $region66
              $region65: #{net_forward.3} parent=43 // pred_region
                %s1134 = sshrl.u32 %s948, 6
                // While loop
                $region67: #{net_forward.3} parent=65 // loop_pre_header
                  _
                $region68: #{net_forward.3} parent=65 // loop_header
                  %s1136 = sphi 0, %s1138
                  %p1137 = scmp.ge.s32.totalorder %s1136, %s1134
                  %s1141 = sphi 0, %s1274
                  %s1142 = sphi %s941, %s1277
                  %s1143 = sphi %s952, %s1278
                $region69: #{net_forward.3} parent=65 // loop_header_branch
                  %1140 = sbr.rel (%p1137) target = $region73
                $region70: #{net_forward.3} parent=65 // loop_body
                  %v1144 = vld [vmem:[%s1142] sm:$0xff]
                  %1145 = vst [vmem:[%s1143] sm:$0xff] %v1144
                  %v1146 = vld [vmem:[%s1142 + $0x8] sm:$0xff]
                  %1147 = vst [vmem:[%s1143 + $0x8] sm:$0xff] %v1146
                  %v1148 = vld [vmem:[%s1142 + $0x10] sm:$0xff]
                  %1149 = vst [vmem:[%s1143 + $0x10] sm:$0xff] %v1148
                  %v1150 = vld [vmem:[%s1142 + $0x18] sm:$0xff]
                  %1151 = vst [vmem:[%s1143 + $0x18] sm:$0xff] %v1150
                  %v1152 = vld [vmem:[%s1142 + $0x20] sm:$0xff]
                  %1153 = vst [vmem:[%s1143 + $0x20] sm:$0xff] %v1152
                  %v1154 = vld [vmem:[%s1142 + $0x28] sm:$0xff]
                  %1155 = vst [vmem:[%s1143 + $0x28] sm:$0xff] %v1154
                  %v1156 = vld [vmem:[%s1142 + $0x30] sm:$0xff]
                  %1157 = vst [vmem:[%s1143 + $0x30] sm:$0xff] %v1156
                  %v1158 = vld [vmem:[%s1142 + $0x38] sm:$0xff]
                  %1159 = vst [vmem:[%s1143 + $0x38] sm:$0xff] %v1158
                  %v1160 = vld [vmem:[%s1142 + $0x40] sm:$0xff]
                  %1161 = vst [vmem:[%s1143 + $0x40] sm:$0xff] %v1160
                  %v1162 = vld [vmem:[%s1142 + $0x48] sm:$0xff]
                  %1163 = vst [vmem:[%s1143 + $0x48] sm:$0xff] %v1162
                  %v1164 = vld [vmem:[%s1142 + $0x50] sm:$0xff]
                  %1165 = vst [vmem:[%s1143 + $0x50] sm:$0xff] %v1164
                  %v1166 = vld [vmem:[%s1142 + $0x58] sm:$0xff]
                  %1167 = vst [vmem:[%s1143 + $0x58] sm:$0xff] %v1166
                  %v1168 = vld [vmem:[%s1142 + $0x60] sm:$0xff]
                  %1169 = vst [vmem:[%s1143 + $0x60] sm:$0xff] %v1168
                  %v1170 = vld [vmem:[%s1142 + $0x68] sm:$0xff]
                  %1171 = vst [vmem:[%s1143 + $0x68] sm:$0xff] %v1170
                  %v1172 = vld [vmem:[%s1142 + $0x70] sm:$0xff]
                  %1173 = vst [vmem:[%s1143 + $0x70] sm:$0xff] %v1172
                  %v1174 = vld [vmem:[%s1142 + $0x78] sm:$0xff]
                  %1175 = vst [vmem:[%s1143 + $0x78] sm:$0xff] %v1174
                  %v1176 = vld [vmem:[%s1142 + $0x80] sm:$0xff]
                  %1177 = vst [vmem:[%s1143 + $0x80] sm:$0xff] %v1176
                  %v1178 = vld [vmem:[%s1142 + $0x88] sm:$0xff]
                  %1179 = vst [vmem:[%s1143 + $0x88] sm:$0xff] %v1178
                  %v1180 = vld [vmem:[%s1142 + $0x90] sm:$0xff]
                  %1181 = vst [vmem:[%s1143 + $0x90] sm:$0xff] %v1180
                  %v1182 = vld [vmem:[%s1142 + $0x98] sm:$0xff]
                  %1183 = vst [vmem:[%s1143 + $0x98] sm:$0xff] %v1182
                  %v1184 = vld [vmem:[%s1142 + $0xa0] sm:$0xff]
                  %1185 = vst [vmem:[%s1143 + $0xa0] sm:$0xff] %v1184
                  %v1186 = vld [vmem:[%s1142 + $0xa8] sm:$0xff]
                  %1187 = vst [vmem:[%s1143 + $0xa8] sm:$0xff] %v1186
                  %v1188 = vld [vmem:[%s1142 + $0xb0] sm:$0xff]
                  %1189 = vst [vmem:[%s1143 + $0xb0] sm:$0xff] %v1188
                  %v1190 = vld [vmem:[%s1142 + $0xb8] sm:$0xff]
                  %1191 = vst [vmem:[%s1143 + $0xb8] sm:$0xff] %v1190
                  %v1192 = vld [vmem:[%s1142 + $0xc0] sm:$0xff]
                  %1193 = vst [vmem:[%s1143 + $0xc0] sm:$0xff] %v1192
                  %v1194 = vld [vmem:[%s1142 + $0xc8] sm:$0xff]
                  %1195 = vst [vmem:[%s1143 + $0xc8] sm:$0xff] %v1194
                  %v1196 = vld [vmem:[%s1142 + $0xd0] sm:$0xff]
                  %1197 = vst [vmem:[%s1143 + $0xd0] sm:$0xff] %v1196
                  %v1198 = vld [vmem:[%s1142 + $0xd8] sm:$0xff]
                  %1199 = vst [vmem:[%s1143 + $0xd8] sm:$0xff] %v1198
                  %v1200 = vld [vmem:[%s1142 + $0xe0] sm:$0xff]
                  %1201 = vst [vmem:[%s1143 + $0xe0] sm:$0xff] %v1200
                  %v1202 = vld [vmem:[%s1142 + $0xe8] sm:$0xff]
                  %1203 = vst [vmem:[%s1143 + $0xe8] sm:$0xff] %v1202
                  %v1204 = vld [vmem:[%s1142 + $0xf0] sm:$0xff]
                  %1205 = vst [vmem:[%s1143 + $0xf0] sm:$0xff] %v1204
                  %v1206 = vld [vmem:[%s1142 + $0xf8] sm:$0xff]
                  %1207 = vst [vmem:[%s1143 + $0xf8] sm:$0xff] %v1206
                  %v1208 = vld [vmem:[%s1142 + $0x100] sm:$0xff]
                  %1209 = vst [vmem:[%s1143 + $0x100] sm:$0xff] %v1208
                  %v1210 = vld [vmem:[%s1142 + $0x108] sm:$0xff]
                  %1211 = vst [vmem:[%s1143 + $0x108] sm:$0xff] %v1210
                  %v1212 = vld [vmem:[%s1142 + $0x110] sm:$0xff]
                  %1213 = vst [vmem:[%s1143 + $0x110] sm:$0xff] %v1212
                  %v1214 = vld [vmem:[%s1142 + $0x118] sm:$0xff]
                  %1215 = vst [vmem:[%s1143 + $0x118] sm:$0xff] %v1214
                  %v1216 = vld [vmem:[%s1142 + $0x120] sm:$0xff]
                  %1217 = vst [vmem:[%s1143 + $0x120] sm:$0xff] %v1216
                  %v1218 = vld [vmem:[%s1142 + $0x128] sm:$0xff]
                  %1219 = vst [vmem:[%s1143 + $0x128] sm:$0xff] %v1218
                  %v1220 = vld [vmem:[%s1142 + $0x130] sm:$0xff]
                  %1221 = vst [vmem:[%s1143 + $0x130] sm:$0xff] %v1220
                  %v1222 = vld [vmem:[%s1142 + $0x138] sm:$0xff]
                  %1223 = vst [vmem:[%s1143 + $0x138] sm:$0xff] %v1222
                  %v1224 = vld [vmem:[%s1142 + $0x140] sm:$0xff]
                  %1225 = vst [vmem:[%s1143 + $0x140] sm:$0xff] %v1224
                  %v1226 = vld [vmem:[%s1142 + $0x148] sm:$0xff]
                  %1227 = vst [vmem:[%s1143 + $0x148] sm:$0xff] %v1226
                  %v1228 = vld [vmem:[%s1142 + $0x150] sm:$0xff]
                  %1229 = vst [vmem:[%s1143 + $0x150] sm:$0xff] %v1228
                  %v1230 = vld [vmem:[%s1142 + $0x158] sm:$0xff]
                  %1231 = vst [vmem:[%s1143 + $0x158] sm:$0xff] %v1230
                  %v1232 = vld [vmem:[%s1142 + $0x160] sm:$0xff]
                  %1233 = vst [vmem:[%s1143 + $0x160] sm:$0xff] %v1232
                  %v1234 = vld [vmem:[%s1142 + $0x168] sm:$0xff]
                  %1235 = vst [vmem:[%s1143 + $0x168] sm:$0xff] %v1234
                  %v1236 = vld [vmem:[%s1142 + $0x170] sm:$0xff]
                  %1237 = vst [vmem:[%s1143 + $0x170] sm:$0xff] %v1236
                  %v1238 = vld [vmem:[%s1142 + $0x178] sm:$0xff]
                  %1239 = vst [vmem:[%s1143 + $0x178] sm:$0xff] %v1238
                  %v1240 = vld [vmem:[%s1142 + $0x180] sm:$0xff]
                  %1241 = vst [vmem:[%s1143 + $0x180] sm:$0xff] %v1240
                  %v1242 = vld [vmem:[%s1142 + $0x188] sm:$0xff]
                  %1243 = vst [vmem:[%s1143 + $0x188] sm:$0xff] %v1242
                  %v1244 = vld [vmem:[%s1142 + $0x190] sm:$0xff]
                  %1245 = vst [vmem:[%s1143 + $0x190] sm:$0xff] %v1244
                  %v1246 = vld [vmem:[%s1142 + $0x198] sm:$0xff]
                  %1247 = vst [vmem:[%s1143 + $0x198] sm:$0xff] %v1246
                  %v1248 = vld [vmem:[%s1142 + $0x1a0] sm:$0xff]
                  %1249 = vst [vmem:[%s1143 + $0x1a0] sm:$0xff] %v1248
                  %v1250 = vld [vmem:[%s1142 + $0x1a8] sm:$0xff]
                  %1251 = vst [vmem:[%s1143 + $0x1a8] sm:$0xff] %v1250
                  %v1252 = vld [vmem:[%s1142 + $0x1b0] sm:$0xff]
                  %1253 = vst [vmem:[%s1143 + $0x1b0] sm:$0xff] %v1252
                  %v1254 = vld [vmem:[%s1142 + $0x1b8] sm:$0xff]
                  %1255 = vst [vmem:[%s1143 + $0x1b8] sm:$0xff] %v1254
                  %v1256 = vld [vmem:[%s1142 + $0x1c0] sm:$0xff]
                  %1257 = vst [vmem:[%s1143 + $0x1c0] sm:$0xff] %v1256
                  %v1258 = vld [vmem:[%s1142 + $0x1c8] sm:$0xff]
                  %1259 = vst [vmem:[%s1143 + $0x1c8] sm:$0xff] %v1258
                  %v1260 = vld [vmem:[%s1142 + $0x1d0] sm:$0xff]
                  %1261 = vst [vmem:[%s1143 + $0x1d0] sm:$0xff] %v1260
                  %v1262 = vld [vmem:[%s1142 + $0x1d8] sm:$0xff]
                  %1263 = vst [vmem:[%s1143 + $0x1d8] sm:$0xff] %v1262
                  %v1264 = vld [vmem:[%s1142 + $0x1e0] sm:$0xff]
                  %1265 = vst [vmem:[%s1143 + $0x1e0] sm:$0xff] %v1264
                  %v1266 = vld [vmem:[%s1142 + $0x1e8] sm:$0xff]
                  %1267 = vst [vmem:[%s1143 + $0x1e8] sm:$0xff] %v1266
                  %v1268 = vld [vmem:[%s1142 + $0x1f0] sm:$0xff]
                  %1269 = vst [vmem:[%s1143 + $0x1f0] sm:$0xff] %v1268
                  %v1270 = vld [vmem:[%s1142 + $0x1f8] sm:$0xff]
                  %1271 = vst [vmem:[%s1143 + $0x1f8] sm:$0xff] %v1270
                  %s1272 = sadd.s32 1, %s1141
                  %p1273 = scmp.ge.s32.totalorder %s1272, %s1134
                  %s1274 = scalar_select %p1273, 0, %s1272
                  %s1275 = smul.u32 %s1274, 512
                  %s1276 = smul.u32 %s1274, 512
                  %s1277 = scalar_lea.vmem %s941, %s1275 [#allocation2]
                  %s1278 = scalar_lea.vmem %s952, %s1276
                $region71: #{net_forward.3} parent=65 // loop_footer
                  %s1138 = sadd.s32 %s1136, 1
                $region72: #{net_forward.3} parent=65 // loop_footer_branch
                  %1135 = sbr.rel target = $region68
                $region73: #{net_forward.3} parent=65 // loop_exit
                  _
                %s1279 = sshrl.u32 %s948, 6
                %s1280 = sand.u32 %s948, 63
                %s1281 = smul.u32 %s1279, 64
                %s1282 = smul.u32 8, %s1281
                %s1283 = scalar_lea.vmem %s941, %s1282 [#allocation2]
                %s1284 = smul.u32 8, %s1281
                %s1285 = scalar_lea.vmem %s952, %s1284
                // While loop
                $region74: #{net_forward.3} parent=65 // loop_pre_header
                  _
                $region75: #{net_forward.3} parent=65 // loop_header
                  %s1287 = sphi 0, %s1289
                  %p1288 = scmp.ge.s32.totalorder %s1287, %s1280
                  %s1292 = sphi 0, %s1299
                  %s1293 = sphi %s1283, %s1302
                  %s1294 = sphi %s1285, %s1303
                $region76: #{net_forward.3} parent=65 // loop_header_branch
                  %1291 = sbr.rel (%p1288) target = $region80
                $region77: #{net_forward.3} parent=65 // loop_body
                  %v1295 = vld [vmem:[%s1293] sm:$0xff]
                  %1296 = vst [vmem:[%s1294] sm:$0xff] %v1295
                  %s1297 = sadd.s32 1, %s1292
                  %p1298 = scmp.ge.s32.totalorder %s1297, %s1280
                  %s1299 = scalar_select %p1298, 0, %s1297
                  %s1300 = smul.u32 %s1299, 8
                  %s1301 = smul.u32 %s1299, 8
                  %s1302 = scalar_lea.vmem %s1283, %s1300 [#allocation2]
                  %s1303 = scalar_lea.vmem %s1285, %s1301
                $region78: #{net_forward.3} parent=65 // loop_footer
                  %s1289 = sadd.s32 %s1287, 1
                $region79: #{net_forward.3} parent=65 // loop_footer_branch
                  %1286 = sbr.rel target = $region75
                $region80: #{net_forward.3} parent=65 // loop_exit
                  _
              $region66: #{net_forward.3} parent=43 // pred_fallthru
                _
              // Predicated region
              $region81: #{net_forward.3} parent=43 // pred_check
                _
              $region82: #{net_forward.3} parent=43 // pred_check_branch
                %1305 = sbr.rel target = $region84
              $region83: #{net_forward.3} parent=43 // pred_region
                _
              $region84: #{net_forward.3} parent=43 // pred_fallthru
                _
            $region44: #{net_forward.3} parent=39 // pred_fallthru
              _
            // Predicated region
            $region45: #{net_forward.3} parent=39 // pred_check
              _
            $region46: #{net_forward.3} parent=39 // pred_check_branch
              %959 = sbr.rel target = $region48
            $region47: #{net_forward.3} parent=39 // pred_region
              %s961 = ssub.s32 256, 1
              %s962 = sshrl.u32 %s948, 6
              // While loop
              $region49: #{net_forward.3} parent=47 // loop_pre_header
                _
              $region50: #{net_forward.3} parent=47 // loop_header
                %s964 = sphi 0, %s966
                %p965 = scmp.ge.s32.totalorder %s964, %s962
                %s969 = sphi 0, %s1102
                %s970 = sphi %s941, %s1105
                %s971 = sphi %s952, %s1106
              $region51: #{net_forward.3} parent=47 // loop_header_branch
                %968 = sbr.rel (%p965) target = $region55
              $region52: #{net_forward.3} parent=47 // loop_body
                %v972 = vld [vmem:[%s970] sm:%s961]
                %973 = vst [vmem:[%s971] sm:%s961] %v972
                %v974 = vld [vmem:[%s970 + $0x8] sm:%s961]
                %975 = vst [vmem:[%s971 + $0x8] sm:%s961] %v974
                %v976 = vld [vmem:[%s970 + $0x10] sm:%s961]
                %977 = vst [vmem:[%s971 + $0x10] sm:%s961] %v976
                %v978 = vld [vmem:[%s970 + $0x18] sm:%s961]
                %979 = vst [vmem:[%s971 + $0x18] sm:%s961] %v978
                %v980 = vld [vmem:[%s970 + $0x20] sm:%s961]
                %981 = vst [vmem:[%s971 + $0x20] sm:%s961] %v980
                %v982 = vld [vmem:[%s970 + $0x28] sm:%s961]
                %983 = vst [vmem:[%s971 + $0x28] sm:%s961] %v982
                %v984 = vld [vmem:[%s970 + $0x30] sm:%s961]
                %985 = vst [vmem:[%s971 + $0x30] sm:%s961] %v984
                %v986 = vld [vmem:[%s970 + $0x38] sm:%s961]
                %987 = vst [vmem:[%s971 + $0x38] sm:%s961] %v986
                %v988 = vld [vmem:[%s970 + $0x40] sm:%s961]
                %989 = vst [vmem:[%s971 + $0x40] sm:%s961] %v988
                %v990 = vld [vmem:[%s970 + $0x48] sm:%s961]
                %991 = vst [vmem:[%s971 + $0x48] sm:%s961] %v990
                %v992 = vld [vmem:[%s970 + $0x50] sm:%s961]
                %993 = vst [vmem:[%s971 + $0x50] sm:%s961] %v992
                %v994 = vld [vmem:[%s970 + $0x58] sm:%s961]
                %995 = vst [vmem:[%s971 + $0x58] sm:%s961] %v994
                %v996 = vld [vmem:[%s970 + $0x60] sm:%s961]
                %997 = vst [vmem:[%s971 + $0x60] sm:%s961] %v996
                %v998 = vld [vmem:[%s970 + $0x68] sm:%s961]
                %999 = vst [vmem:[%s971 + $0x68] sm:%s961] %v998
                %v1000 = vld [vmem:[%s970 + $0x70] sm:%s961]
                %1001 = vst [vmem:[%s971 + $0x70] sm:%s961] %v1000
                %v1002 = vld [vmem:[%s970 + $0x78] sm:%s961]
                %1003 = vst [vmem:[%s971 + $0x78] sm:%s961] %v1002
                %v1004 = vld [vmem:[%s970 + $0x80] sm:%s961]
                %1005 = vst [vmem:[%s971 + $0x80] sm:%s961] %v1004
                %v1006 = vld [vmem:[%s970 + $0x88] sm:%s961]
                %1007 = vst [vmem:[%s971 + $0x88] sm:%s961] %v1006
                %v1008 = vld [vmem:[%s970 + $0x90] sm:%s961]
                %1009 = vst [vmem:[%s971 + $0x90] sm:%s961] %v1008
                %v1010 = vld [vmem:[%s970 + $0x98] sm:%s961]
                %1011 = vst [vmem:[%s971 + $0x98] sm:%s961] %v1010
                %v1012 = vld [vmem:[%s970 + $0xa0] sm:%s961]
                %1013 = vst [vmem:[%s971 + $0xa0] sm:%s961] %v1012
                %v1014 = vld [vmem:[%s970 + $0xa8] sm:%s961]
                %1015 = vst [vmem:[%s971 + $0xa8] sm:%s961] %v1014
                %v1016 = vld [vmem:[%s970 + $0xb0] sm:%s961]
                %1017 = vst [vmem:[%s971 + $0xb0] sm:%s961] %v1016
                %v1018 = vld [vmem:[%s970 + $0xb8] sm:%s961]
                %1019 = vst [vmem:[%s971 + $0xb8] sm:%s961] %v1018
                %v1020 = vld [vmem:[%s970 + $0xc0] sm:%s961]
                %1021 = vst [vmem:[%s971 + $0xc0] sm:%s961] %v1020
                %v1022 = vld [vmem:[%s970 + $0xc8] sm:%s961]
                %1023 = vst [vmem:[%s971 + $0xc8] sm:%s961] %v1022
                %v1024 = vld [vmem:[%s970 + $0xd0] sm:%s961]
                %1025 = vst [vmem:[%s971 + $0xd0] sm:%s961] %v1024
                %v1026 = vld [vmem:[%s970 + $0xd8] sm:%s961]
                %1027 = vst [vmem:[%s971 + $0xd8] sm:%s961] %v1026
                %v1028 = vld [vmem:[%s970 + $0xe0] sm:%s961]
                %1029 = vst [vmem:[%s971 + $0xe0] sm:%s961] %v1028
                %v1030 = vld [vmem:[%s970 + $0xe8] sm:%s961]
                %1031 = vst [vmem:[%s971 + $0xe8] sm:%s961] %v1030
                %v1032 = vld [vmem:[%s970 + $0xf0] sm:%s961]
                %1033 = vst [vmem:[%s971 + $0xf0] sm:%s961] %v1032
                %v1034 = vld [vmem:[%s970 + $0xf8] sm:%s961]
                %1035 = vst [vmem:[%s971 + $0xf8] sm:%s961] %v1034
                %v1036 = vld [vmem:[%s970 + $0x100] sm:%s961]
                %1037 = vst [vmem:[%s971 + $0x100] sm:%s961] %v1036
                %v1038 = vld [vmem:[%s970 + $0x108] sm:%s961]
                %1039 = vst [vmem:[%s971 + $0x108] sm:%s961] %v1038
                %v1040 = vld [vmem:[%s970 + $0x110] sm:%s961]
                %1041 = vst [vmem:[%s971 + $0x110] sm:%s961] %v1040
                %v1042 = vld [vmem:[%s970 + $0x118] sm:%s961]
                %1043 = vst [vmem:[%s971 + $0x118] sm:%s961] %v1042
                %v1044 = vld [vmem:[%s970 + $0x120] sm:%s961]
                %1045 = vst [vmem:[%s971 + $0x120] sm:%s961] %v1044
                %v1046 = vld [vmem:[%s970 + $0x128] sm:%s961]
                %1047 = vst [vmem:[%s971 + $0x128] sm:%s961] %v1046
                %v1048 = vld [vmem:[%s970 + $0x130] sm:%s961]
                %1049 = vst [vmem:[%s971 + $0x130] sm:%s961] %v1048
                %v1050 = vld [vmem:[%s970 + $0x138] sm:%s961]
                %1051 = vst [vmem:[%s971 + $0x138] sm:%s961] %v1050
                %v1052 = vld [vmem:[%s970 + $0x140] sm:%s961]
                %1053 = vst [vmem:[%s971 + $0x140] sm:%s961] %v1052
                %v1054 = vld [vmem:[%s970 + $0x148] sm:%s961]
                %1055 = vst [vmem:[%s971 + $0x148] sm:%s961] %v1054
                %v1056 = vld [vmem:[%s970 + $0x150] sm:%s961]
                %1057 = vst [vmem:[%s971 + $0x150] sm:%s961] %v1056
                %v1058 = vld [vmem:[%s970 + $0x158] sm:%s961]
                %1059 = vst [vmem:[%s971 + $0x158] sm:%s961] %v1058
                %v1060 = vld [vmem:[%s970 + $0x160] sm:%s961]
                %1061 = vst [vmem:[%s971 + $0x160] sm:%s961] %v1060
                %v1062 = vld [vmem:[%s970 + $0x168] sm:%s961]
                %1063 = vst [vmem:[%s971 + $0x168] sm:%s961] %v1062
                %v1064 = vld [vmem:[%s970 + $0x170] sm:%s961]
                %1065 = vst [vmem:[%s971 + $0x170] sm:%s961] %v1064
                %v1066 = vld [vmem:[%s970 + $0x178] sm:%s961]
                %1067 = vst [vmem:[%s971 + $0x178] sm:%s961] %v1066
                %v1068 = vld [vmem:[%s970 + $0x180] sm:%s961]
                %1069 = vst [vmem:[%s971 + $0x180] sm:%s961] %v1068
                %v1070 = vld [vmem:[%s970 + $0x188] sm:%s961]
                %1071 = vst [vmem:[%s971 + $0x188] sm:%s961] %v1070
                %v1072 = vld [vmem:[%s970 + $0x190] sm:%s961]
                %1073 = vst [vmem:[%s971 + $0x190] sm:%s961] %v1072
                %v1074 = vld [vmem:[%s970 + $0x198] sm:%s961]
                %1075 = vst [vmem:[%s971 + $0x198] sm:%s961] %v1074
                %v1076 = vld [vmem:[%s970 + $0x1a0] sm:%s961]
                %1077 = vst [vmem:[%s971 + $0x1a0] sm:%s961] %v1076
                %v1078 = vld [vmem:[%s970 + $0x1a8] sm:%s961]
                %1079 = vst [vmem:[%s971 + $0x1a8] sm:%s961] %v1078
                %v1080 = vld [vmem:[%s970 + $0x1b0] sm:%s961]
                %1081 = vst [vmem:[%s971 + $0x1b0] sm:%s961] %v1080
                %v1082 = vld [vmem:[%s970 + $0x1b8] sm:%s961]
                %1083 = vst [vmem:[%s971 + $0x1b8] sm:%s961] %v1082
                %v1084 = vld [vmem:[%s970 + $0x1c0] sm:%s961]
                %1085 = vst [vmem:[%s971 + $0x1c0] sm:%s961] %v1084
                %v1086 = vld [vmem:[%s970 + $0x1c8] sm:%s961]
                %1087 = vst [vmem:[%s971 + $0x1c8] sm:%s961] %v1086
                %v1088 = vld [vmem:[%s970 + $0x1d0] sm:%s961]
                %1089 = vst [vmem:[%s971 + $0x1d0] sm:%s961] %v1088
                %v1090 = vld [vmem:[%s970 + $0x1d8] sm:%s961]
                %1091 = vst [vmem:[%s971 + $0x1d8] sm:%s961] %v1090
                %v1092 = vld [vmem:[%s970 + $0x1e0] sm:%s961]
                %1093 = vst [vmem:[%s971 + $0x1e0] sm:%s961] %v1092
                %v1094 = vld [vmem:[%s970 + $0x1e8] sm:%s961]
                %1095 = vst [vmem:[%s971 + $0x1e8] sm:%s961] %v1094
                %v1096 = vld [vmem:[%s970 + $0x1f0] sm:%s961]
                %1097 = vst [vmem:[%s971 + $0x1f0] sm:%s961] %v1096
                %v1098 = vld [vmem:[%s970 + $0x1f8] sm:%s961]
                %1099 = vst [vmem:[%s971 + $0x1f8] sm:%s961] %v1098
                %s1100 = sadd.s32 1, %s969
                %p1101 = scmp.ge.s32.totalorder %s1100, %s962
                %s1102 = scalar_select %p1101, 0, %s1100
                %s1103 = smul.u32 %s1102, 512
                %s1104 = smul.u32 %s1102, 512
                %s1105 = scalar_lea.vmem %s941, %s1103 [#allocation2]
                %s1106 = scalar_lea.vmem %s952, %s1104
              $region53: #{net_forward.3} parent=47 // loop_footer
                %s966 = sadd.s32 %s964, 1
              $region54: #{net_forward.3} parent=47 // loop_footer_branch
                %963 = sbr.rel target = $region50
              $region55: #{net_forward.3} parent=47 // loop_exit
                _
              %s1107 = sshrl.u32 %s948, 6
              %s1108 = sand.u32 %s948, 63
              %s1109 = smul.u32 %s1107, 64
              %s1110 = smul.u32 8, %s1109
              %s1111 = scalar_lea.vmem %s941, %s1110 [#allocation2]
              %s1112 = smul.u32 8, %s1109
              %s1113 = scalar_lea.vmem %s952, %s1112
              // While loop
              $region56: #{net_forward.3} parent=47 // loop_pre_header
                _
              $region57: #{net_forward.3} parent=47 // loop_header
                %s1115 = sphi 0, %s1117
                %p1116 = scmp.ge.s32.totalorder %s1115, %s1108
                %s1120 = sphi 0, %s1127
                %s1121 = sphi %s1111, %s1130
                %s1122 = sphi %s1113, %s1131
              $region58: #{net_forward.3} parent=47 // loop_header_branch
                %1119 = sbr.rel (%p1116) target = $region62
              $region59: #{net_forward.3} parent=47 // loop_body
                %v1123 = vld [vmem:[%s1121] sm:%s961]
                %1124 = vst [vmem:[%s1122] sm:%s961] %v1123
                %s1125 = sadd.s32 1, %s1120
                %p1126 = scmp.ge.s32.totalorder %s1125, %s1108
                %s1127 = scalar_select %p1126, 0, %s1125
                %s1128 = smul.u32 %s1127, 8
                %s1129 = smul.u32 %s1127, 8
                %s1130 = scalar_lea.vmem %s1111, %s1128 [#allocation2]
                %s1131 = scalar_lea.vmem %s1113, %s1129
              $region60: #{net_forward.3} parent=47 // loop_footer
                %s1117 = sadd.s32 %s1115, 1
              $region61: #{net_forward.3} parent=47 // loop_footer_branch
                %1114 = sbr.rel target = $region57
              $region62: #{net_forward.3} parent=47 // loop_exit
                _
            $region48: #{net_forward.3} parent=39 // pred_fallthru
              _
          $region40: #{net_forward.3} parent=35 // pred_fallthru
            _
          %1306 = vnop
        $region36: #{net_forward.3} parent=31 // pred_fallthru
          _
      $region32: #{net_forward.3} parent=5 // pred_fallthru
        _
      %p1307 = scmp.le.s32.totalorder 2, %s9
      // Predicated region
      $region85: #{net_forward.3} parent=5 // pred_check
        %p1308 = pneg %p1307
      $region86: #{net_forward.3} parent=5 // pred_check_branch
        %1310 = sbr.rel (%p1308) target = $region88
      $region87: #{net_forward.3} parent=5 // pred_region
        %s1311 = ssub.s32 %s9, 2
        // Predicated region
        $region89: #{net_forward.3} parent=87 // pred_check
          %p1312 = pneg %p106
        $region90: #{net_forward.3} parent=87 // pred_check_branch
          %1314 = sbr.rel (%p1312) target = $region92
        $region91: #{net_forward.3} parent=87 // pred_region
          %s1315 = sand.u32 %s91, 1
          %s1316 = sand.u32 %s91, 1
          %s1317 = smul.addr %s1316, 512
          %s1318 = scalar_lea.vmem [#allocation2], %s1317
        $region92: #{net_forward.3} parent=87 // pred_fallthru
          _
      $region88: #{net_forward.3} parent=5 // pred_fallthru
        _
    $region6: #{net_forward.3} parent=1 // loop_footer
      %s13 = sadd.s32 1, %s9
    $region7: #{net_forward.3} parent=1 // loop_footer_branch
      %8 = sbr.rel target = $region3
    $region8: #{net_forward.3} parent=1 // loop_exit
      _

// kernel: net_forward.4
$region0: #{net_forward.4}
  #allocation0 [shape = 'u32[]', space=smem, size = 0x4, offset = 0x4, fixed_abs, tag = 'smem constant byte address 0x4 - core index']
  #allocation1 [shape = 'u32[144,128]{1,0:T(1,128)}', space=vmem, size = 0x12000, scoped, tag = 'internal scratch']
  %s0 = inlined_call_operand.vmem [shape: bf16[200,256], index: 0, kind: input, shape index: {}]
  %s1 = inlined_call_operand.vmem [shape: bf16[256,16], index: 1, kind: input, shape index: {}]
  %s2 = inlined_call_operand.vmem [shape: f32[1,16], index: 2, kind: input, shape index: {}]
  %s3 = inlined_call_operand.vmem [shape: f32[200,16], index: 3, kind: output, shape index: {}]
  %s4 = sld [smem:[#allocation0]]
  $region22: #{net_forward.4} parent=0
    _
  %s6 = ssub.s32 1, %s4
  %s7 = scalar_select 0, %s6, %s4
  // Predicated region
  $region2: #{net_forward.4} parent=0 // pred_check
    _
  $region3: #{net_forward.4} parent=0 // pred_check_branch
    %9 = sbr.rel (0) target = $region5
  $region4: #{net_forward.4} parent=0 // pred_region
    _
  $region5: #{net_forward.4} parent=0 // pred_fallthru
    _
  // Predicated region
  $region6: #{net_forward.4} parent=0 // pred_check
    _
  $region7: #{net_forward.4} parent=0 // pred_check_branch
    %11 = sbr.rel (0) target = $region9
  $region8: #{net_forward.4} parent=0 // pred_region
    _
  $region9: #{net_forward.4} parent=0 // pred_fallthru
    _
  // Predicated region
  $region10: #{net_forward.4} parent=0 // pred_check
    _
  $region11: #{net_forward.4} parent=0 // pred_check_branch
    %13 = sbr.rel (0) target = $region13
  $region12: #{net_forward.4} parent=0 // pred_region
    _
  $region13: #{net_forward.4} parent=0 // pred_fallthru
    _
  %v15 = vld [vmem:[%s0] sm:$0xff]
  %v16 = vld [vmem:[%s0 + $0x8] sm:$0xff]
  %v17 = vld [vmem:[%s0 + $0x10] sm:$0xff]
  %v18 = vld [vmem:[%s0 + $0x18] sm:$0xff]
  %v19 = vld [vmem:[%s0 + $0x20] sm:$0xff]
  %v20 = vld [vmem:[%s0 + $0x28] sm:$0xff]
  %v21 = vld [vmem:[%s0 + $0x30] sm:$0xff]
  %v22 = vld [vmem:[%s0 + $0x38] sm:$0xff]
  %v23 = vld [vmem:[%s0 + $0x40] sm:$0xff]
  %v24 = vld [vmem:[%s0 + $0x48] sm:$0xff]
  %v25 = vld [vmem:[%s0 + $0x50] sm:$0xff]
  %v26 = vld [vmem:[%s0 + $0x58] sm:$0xff]
  %v27 = vld [vmem:[%s0 + $0x60] sm:$0xff]
  %v28 = vld [vmem:[%s0 + $0x68] sm:$0xff]
  %v29 = vld [vmem:[%s0 + $0x70] sm:$0xff]
  %v30 = vld [vmem:[%s0 + $0x78] sm:$0xff]
  %v31 = vld [vmem:[%s0 + $0x80] sm:$0xff]
  %v32 = vld [vmem:[%s0 + $0x88] sm:$0xff]
  %v33 = vld [vmem:[%s0 + $0x90] sm:$0xff]
  %v34 = vld [vmem:[%s0 + $0x98] sm:$0xff]
  %v35 = vld [vmem:[%s0 + $0xa0] sm:$0xff]
  %v36 = vld [vmem:[%s0 + $0xa8] sm:$0xff]
  %v37 = vld [vmem:[%s0 + $0xb0] sm:$0xff]
  %v38 = vld [vmem:[%s0 + $0xb8] sm:$0xff]
  %v39 = vld [vmem:[%s0 + $0xc0] sm:$0xff]
  %v40 = vld [vmem:[%s1] sm:$0xf]
  %v41 = vld [vmem:[%s1 + $0x4] sm:$0xf]
  %v42 = vld [vmem:[%s1 + $0x8] sm:$0xf]
  %v43 = vld [vmem:[%s1 + $0xc] sm:$0xf]
  %v44 = vld [vmem:[%s1 + $0x10] sm:$0xf]
  %v45 = vld [vmem:[%s1 + $0x14] sm:$0xf]
  %v46 = vld [vmem:[%s1 + $0x18] sm:$0xf]
  %v47 = vld [vmem:[%s1 + $0x1c] sm:$0xf]
  %v48 = vld [vmem:[%s1 + $0x20] sm:$0xf]
  %v49 = vld [vmem:[%s1 + $0x24] sm:$0xf]
  %v50 = vld [vmem:[%s1 + $0x28] sm:$0xf]
  %v51 = vld [vmem:[%s1 + $0x2c] sm:$0xf]
  %v52 = vld [vmem:[%s1 + $0x30] sm:$0xf]
  %v53 = vld [vmem:[%s1 + $0x34] sm:$0xf]
  %v54 = vld [vmem:[%s1 + $0x38] sm:$0xf]
  %v55 = vld [vmem:[%s1 + $0x3c] sm:$0xf]
  %v56 = vld [vmem:[%s1 + $0x40] sm:$0xf]
  %v57 = vld [vmem:[%s1 + $0x44] sm:$0xf]
  %v58 = vld [vmem:[%s1 + $0x48] sm:$0xf]
  %v59 = vld [vmem:[%s1 + $0x4c] sm:$0xf]
  %v60 = vld [vmem:[%s1 + $0x50] sm:$0xf]
  %v61 = vld [vmem:[%s1 + $0x54] sm:$0xf]
  %v62 = vld [vmem:[%s1 + $0x58] sm:$0xf]
  %v63 = vld [vmem:[%s1 + $0x5c] sm:$0xf]
  %v64 = vld [vmem:[%s1 + $0x60] sm:$0xf]
  %v65 = vld [vmem:[%s1 + $0x64] sm:$0xf]
  %v66 = vld [vmem:[%s1 + $0x68] sm:$0xf]
  %v67 = vld [vmem:[%s1 + $0x6c] sm:$0xf]
  %v68 = vld [vmem:[%s1 + $0x70] sm:$0xf]
  %v69 = vld [vmem:[%s1 + $0x74] sm:$0xf]
  %v70 = vld [vmem:[%s1 + $0x78] sm:$0xf]
  %v71 = vld [vmem:[%s1 + $0x7c] sm:$0xf]
  %v72 = vld [vmem:[%s2] sm:$0x1]
  %v74 = vlaneseq
  %v75 = vshrl.u32 %v74, 7
  %v76 = vsub.s32 0, %v75
  %v77 = vrot.slane %v72, %v76
  %v104 = vunpack.c.l.b16 %v15
  %v105 = vunpack.c.h.b16 %v15
  %v106 = vunpack.c.l.b16 %v16
  %v107 = vunpack.c.h.b16 %v16
  %v108 = vunpack.c.l.b16 %v17
  %v109 = vunpack.c.h.b16 %v17
  %v110 = vunpack.c.l.b16 %v18
  %v111 = vunpack.c.h.b16 %v18
  %v112 = vunpack.c.l.b16 %v19
  %v113 = vunpack.c.h.b16 %v19
  %v114 = vunpack.c.l.b16 %v20
  %v115 = vunpack.c.h.b16 %v20
  %v116 = vunpack.c.l.b16 %v21
  %v117 = vunpack.c.h.b16 %v21
  %v118 = vunpack.c.l.b16 %v22
  %v119 = vunpack.c.h.b16 %v22
  %v120 = vunpack.c.l.b16 %v23
  %v121 = vunpack.c.h.b16 %v23
  %v122 = vunpack.c.l.b16 %v24
  %v123 = vunpack.c.h.b16 %v24
  %v124 = vunpack.c.l.b16 %v25
  %v125 = vunpack.c.h.b16 %v25
  %v126 = vunpack.c.l.b16 %v26
  %v127 = vunpack.c.h.b16 %v26
  %v128 = vunpack.c.l.b16 %v27
  %v129 = vunpack.c.h.b16 %v27
  %v130 = vunpack.c.l.b16 %v28
  %v131 = vunpack.c.h.b16 %v28
  %v132 = vunpack.c.l.b16 %v29
  %v133 = vunpack.c.h.b16 %v29
  %v134 = vunpack.c.l.b16 %v30
  %v135 = vunpack.c.h.b16 %v30
  %v136 = vunpack.c.l.b16 %v31
  %v137 = vunpack.c.h.b16 %v31
  %v138 = vunpack.c.l.b16 %v32
  %v139 = vunpack.c.h.b16 %v32
  %v140 = vunpack.c.l.b16 %v33
  %v141 = vunpack.c.h.b16 %v33
  %v142 = vunpack.c.l.b16 %v34
  %v143 = vunpack.c.h.b16 %v34
  %v144 = vunpack.c.l.b16 %v35
  %v145 = vunpack.c.h.b16 %v35
  %v146 = vunpack.c.l.b16 %v36
  %v147 = vunpack.c.h.b16 %v36
  %v148 = vunpack.c.l.b16 %v37
  %v149 = vunpack.c.h.b16 %v37
  %v150 = vunpack.c.l.b16 %v38
  %v151 = vunpack.c.h.b16 %v38
  %v152 = vunpack.c.l.b16 %v39
  %v153 = vunpack.c.h.b16 %v39
  %v154 = vpack.c.b16 %v106, %v104
  %v155 = vpack.c.b16 %v107, %v105
  %v156 = vpack.c.b16 %v110, %v108
  %v157 = vpack.c.b16 %v111, %v109
  %v158 = vpack.c.b16 %v114, %v112
  %v159 = vpack.c.b16 %v115, %v113
  %v160 = vpack.c.b16 %v118, %v116
  %v161 = vpack.c.b16 %v119, %v117
  %v162 = vpack.c.b16 %v122, %v120
  %v163 = vpack.c.b16 %v123, %v121
  %v164 = vpack.c.b16 %v126, %v124
  %v165 = vpack.c.b16 %v127, %v125
  %v166 = vpack.c.b16 %v130, %v128
  %v167 = vpack.c.b16 %v131, %v129
  %v168 = vpack.c.b16 %v134, %v132
  %v169 = vpack.c.b16 %v135, %v133
  %v170 = vpack.c.b16 %v138, %v136
  %v171 = vpack.c.b16 %v139, %v137
  %v172 = vpack.c.b16 %v142, %v140
  %v173 = vpack.c.b16 %v143, %v141
  %v174 = vpack.c.b16 %v146, %v144
  %v175 = vpack.c.b16 %v147, %v145
  %v176 = vpack.c.b16 %v150, %v148
  %v177 = vpack.c.b16 %v151, %v149
  %v178 = vpack.c.b16 %v152, %v152
  %v179 = vpack.c.b16 %v153, %v153
  %v238 = vunpack.c.l.b16 %v40
  %v239 = vunpack.c.l.b16 %v41
  %v240 = vunpack.c.l.b16 %v42
  %v241 = vunpack.c.l.b16 %v43
  %v242 = vunpack.c.l.b16 %v44
  %v243 = vunpack.c.l.b16 %v45
  %v244 = vunpack.c.l.b16 %v46
  %v245 = vunpack.c.l.b16 %v47
  %v246 = vunpack.c.l.b16 %v48
  %v247 = vunpack.c.l.b16 %v49
  %v248 = vunpack.c.l.b16 %v50
  %v249 = vunpack.c.l.b16 %v51
  %v250 = vunpack.c.l.b16 %v52
  %v251 = vunpack.c.l.b16 %v53
  %v252 = vunpack.c.l.b16 %v54
  %v253 = vunpack.c.l.b16 %v55
  %v254 = vunpack.c.l.b16 %v56
  %v255 = vunpack.c.l.b16 %v57
  %v256 = vunpack.c.l.b16 %v58
  %v257 = vunpack.c.l.b16 %v59
  %v258 = vunpack.c.l.b16 %v60
  %v259 = vunpack.c.l.b16 %v61
  %v260 = vunpack.c.l.b16 %v62
  %v261 = vunpack.c.l.b16 %v63
  %v262 = vunpack.c.l.b16 %v64
  %v263 = vunpack.c.l.b16 %v65
  %v264 = vunpack.c.l.b16 %v66
  %v265 = vunpack.c.l.b16 %v67
  %v266 = vunpack.c.l.b16 %v68
  %v267 = vunpack.c.l.b16 %v69
  %v268 = vunpack.c.l.b16 %v70
  %v269 = vunpack.c.l.b16 %v71
  %v270 = vpack.c.b16 %v239, %v238
  %v271 = vpack.c.b16 %v241, %v240
  %v272 = vpack.c.b16 %v243, %v242
  %v273 = vpack.c.b16 %v245, %v244
  %v274 = vpack.c.b16 %v247, %v246
  %v275 = vpack.c.b16 %v249, %v248
  %v276 = vpack.c.b16 %v251, %v250
  %v277 = vpack.c.b16 %v253, %v252
  %v278 = vpack.c.b16 %v255, %v254
  %v279 = vpack.c.b16 %v257, %v256
  %v280 = vpack.c.b16 %v259, %v258
  %v281 = vpack.c.b16 %v261, %v260
  %v282 = vpack.c.b16 %v263, %v262
  %v283 = vpack.c.b16 %v265, %v264
  %v284 = vpack.c.b16 %v267, %v266
  %v285 = vpack.c.b16 %v269, %v268
  %302 = vmatprep.subr.bf16.mxu0 0
  %303 = vmatpush1.bf16.msra.mxu0 %v277
  %304 = vmatprep.subr.bf16.mxu0 0
  %305 = vmatpush1.bf16.msra.mxu0 %v276
  %306 = vmatprep.subr.bf16.mxu0 0
  %307 = vmatpush1.bf16.msra.mxu0 %v275
  %308 = vmatprep.subr.bf16.mxu0 0
  %309 = vmatpush1.bf16.msra.mxu0 %v274
  %310 = vmatprep.subr.bf16.mxu0 0
  %311 = vmatpush1.bf16.msra.mxu0 %v273
  %312 = vmatprep.subr.bf16.mxu0 0
  %313 = vmatpush1.bf16.msra.mxu0 %v272
  %314 = vmatprep.subr.bf16.mxu0 0
  %315 = vmatpush1.bf16.msra.mxu0 %v271
  %316 = vmatprep.subr.bf16.mxu0 0
  %317 = vmatpush1.bf16.msra.mxu0 %v270
  %318 = vmatprep.subr.bf16.mxu0 0
  %319 = vmatpush2.bf16.msra.mxu0 %v285
  %320 = vmatprep.subr.bf16.mxu0 0
  %321 = vmatpush2.bf16.msra.mxu0 %v284
  %322 = vmatprep.subr.bf16.mxu0 0
  %323 = vmatpush2.bf16.msra.mxu0 %v283
  %324 = vmatprep.subr.bf16.mxu0 0
  %325 = vmatpush2.bf16.msra.mxu0 %v282
  %326 = vmatprep.subr.bf16.mxu0 0
  %327 = vmatpush2.bf16.msra.mxu0 %v281
  %328 = vmatprep.subr.bf16.mxu0 0
  %329 = vmatpush2.bf16.msra.mxu0 %v280
  %330 = vmatprep.subr.bf16.mxu0 0
  %331 = vmatpush2.bf16.msra.mxu0 %v279
  %332 = vmatprep.subr.bf16.mxu0 0
  %333 = vmatpush2.bf16.msra.mxu0 %v278
  %334 = vmatprep.mubr.bf16.mxu0 %v155
  %335 = vmatmul.mubr.bf16.gmra.mxu0 %v154
  %v336 = vpop.f32.mrf.mxu0
  %v337 = vadd.f32 %v77, %v336
  %v338 = vpop.f32.mrf.mxu0
  %v339 = vpop.f32.mrf.mxu0
  %v340 = vadd.f32 %v77, %v339
  %v341 = vpop.f32.mrf.mxu0
  %342 = vmatprep.mubr.bf16.mxu0 %v157
  %343 = vmatmul.mubr.bf16.gmra.mxu0 %v156
  %v344 = vpop.f32.mrf.mxu0
  %v345 = vadd.f32 %v77, %v344
  %v346 = vpop.f32.mrf.mxu0
  %v347 = vpop.f32.mrf.mxu0
  %v348 = vadd.f32 %v77, %v347
  %v349 = vpop.f32.mrf.mxu0
  %350 = vmatprep.mubr.bf16.mxu0 %v159
  %351 = vmatmul.mubr.bf16.gmra.mxu0 %v158
  %v352 = vpop.f32.mrf.mxu0
  %v353 = vadd.f32 %v77, %v352
  %v354 = vpop.f32.mrf.mxu0
  %v355 = vpop.f32.mrf.mxu0
  %v356 = vadd.f32 %v77, %v355
  %v357 = vpop.f32.mrf.mxu0
  %358 = vmatprep.mubr.bf16.mxu0 %v161
  %359 = vmatmul.mubr.bf16.gmra.mxu0 %v160
  %v360 = vpop.f32.mrf.mxu0
  %v361 = vadd.f32 %v77, %v360
  %v362 = vpop.f32.mrf.mxu0
  %v363 = vpop.f32.mrf.mxu0
  %v364 = vadd.f32 %v77, %v363
  %v365 = vpop.f32.mrf.mxu0
  %366 = vmatprep.mubr.bf16.mxu0 %v163
  %367 = vmatmul.mubr.bf16.gmra.mxu0 %v162
  %v368 = vpop.f32.mrf.mxu0
  %v369 = vadd.f32 %v77, %v368
  %v370 = vpop.f32.mrf.mxu0
  %v371 = vpop.f32.mrf.mxu0
  %v372 = vadd.f32 %v77, %v371
  %v373 = vpop.f32.mrf.mxu0
  %374 = vmatprep.mubr.bf16.mxu0 %v165
  %375 = vmatmul.mubr.bf16.gmra.mxu0 %v164
  %v376 = vpop.f32.mrf.mxu0
  %v377 = vadd.f32 %v77, %v376
  %v378 = vpop.f32.mrf.mxu0
  %v379 = vpop.f32.mrf.mxu0
  %v380 = vadd.f32 %v77, %v379
  %v381 = vpop.f32.mrf.mxu0
  %382 = vmatprep.mubr.bf16.mxu0 %v167
  %383 = vmatmul.mubr.bf16.gmra.mxu0 %v166
  %v384 = vpop.f32.mrf.mxu0
  %v385 = vadd.f32 %v77, %v384
  %v386 = vpop.f32.mrf.mxu0
  %v387 = vpop.f32.mrf.mxu0
  %v388 = vadd.f32 %v77, %v387
  %v389 = vpop.f32.mrf.mxu0
  %390 = vmatprep.mubr.bf16.mxu0 %v169
  %391 = vmatmul.mubr.bf16.gmra.mxu0 %v168
  %v392 = vpop.f32.mrf.mxu0
  %v393 = vadd.f32 %v77, %v392
  %v394 = vpop.f32.mrf.mxu0
  %v395 = vpop.f32.mrf.mxu0
  %v396 = vadd.f32 %v77, %v395
  %v397 = vpop.f32.mrf.mxu0
  %398 = vmatprep.mubr.bf16.mxu0 %v171
  %399 = vmatmul.mubr.bf16.gmra.mxu0 %v170
  %v400 = vpop.f32.mrf.mxu0
  %v401 = vadd.f32 %v77, %v400
  %v402 = vpop.f32.mrf.mxu0
  %v403 = vpop.f32.mrf.mxu0
  %v404 = vadd.f32 %v77, %v403
  %v405 = vpop.f32.mrf.mxu0
  %406 = vmatprep.mubr.bf16.mxu0 %v173
  %407 = vmatmul.mubr.bf16.gmra.mxu0 %v172
  %v408 = vpop.f32.mrf.mxu0
  %v409 = vadd.f32 %v77, %v408
  %v410 = vpop.f32.mrf.mxu0
  %v411 = vpop.f32.mrf.mxu0
  %v412 = vadd.f32 %v77, %v411
  %v413 = vpop.f32.mrf.mxu0
  %414 = vmatprep.mubr.bf16.mxu0 %v175
  %415 = vmatmul.mubr.bf16.gmra.mxu0 %v174
  %v416 = vpop.f32.mrf.mxu0
  %v417 = vadd.f32 %v77, %v416
  %v418 = vpop.f32.mrf.mxu0
  %v419 = vpop.f32.mrf.mxu0
  %v420 = vadd.f32 %v77, %v419
  %v421 = vpop.f32.mrf.mxu0
  %422 = vmatprep.mubr.bf16.mxu0 %v177
  %423 = vmatmul.mubr.bf16.gmra.mxu0 %v176
  %v424 = vpop.f32.mrf.mxu0
  %v425 = vadd.f32 %v77, %v424
  %v426 = vpop.f32.mrf.mxu0
  %v427 = vpop.f32.mrf.mxu0
  %v428 = vadd.f32 %v77, %v427
  %v429 = vpop.f32.mrf.mxu0
  %430 = vmatprep.mubr.bf16.mxu0 %v179
  %431 = vmatmul.mubr.bf16.gmra.mxu0 %v178
  %v432 = vpop.f32.mrf.mxu0
  %v433 = vadd.f32 %v77, %v432
  %v434 = vpop.f32.mrf.mxu0
  %v435 = vpop.f32.mrf.mxu0
  %v436 = vpop.f32.mrf.mxu0
  %437 = vdwg.mxu0
  %v438 = vmax.f32 %v337, 0.0
  %v439 = vmax.f32 %v340, 0.0
  %v440 = vmax.f32 %v345, 0.0
  %v441 = vmax.f32 %v348, 0.0
  %v442 = vmax.f32 %v353, 0.0
  %v443 = vmax.f32 %v356, 0.0
  %v444 = vmax.f32 %v361, 0.0
  %v445 = vmax.f32 %v364, 0.0
  %v446 = vmax.f32 %v369, 0.0
  %v447 = vmax.f32 %v372, 0.0
  %v448 = vmax.f32 %v377, 0.0
  %v449 = vmax.f32 %v380, 0.0
  %v450 = vmax.f32 %v385, 0.0
  %v451 = vmax.f32 %v388, 0.0
  %v452 = vmax.f32 %v393, 0.0
  %v453 = vmax.f32 %v396, 0.0
  %v454 = vmax.f32 %v401, 0.0
  %v455 = vmax.f32 %v404, 0.0
  %v456 = vmax.f32 %v409, 0.0
  %v457 = vmax.f32 %v412, 0.0
  %v458 = vmax.f32 %v417, 0.0
  %v459 = vmax.f32 %v420, 0.0
  %v460 = vmax.f32 %v425, 0.0
  %v461 = vmax.f32 %v428, 0.0
  %v462 = vmax.f32 %v433, 0.0
  %vm463 = vcmask 130048
  %464 = vst.msk [vmem:[%s3] sm:$0xff] %vm463, %v438
  %465 = vst.msk [vmem:[%s3 + $0x8] sm:$0xff] %vm463, %v439
  %466 = vst.msk [vmem:[%s3 + $0x10] sm:$0xff] %vm463, %v440
  %467 = vst.msk [vmem:[%s3 + $0x18] sm:$0xff] %vm463, %v441
  %468 = vst.msk [vmem:[%s3 + $0x20] sm:$0xff] %vm463, %v442
  %469 = vst.msk [vmem:[%s3 + $0x28] sm:$0xff] %vm463, %v443
  %470 = vst.msk [vmem:[%s3 + $0x30] sm:$0xff] %vm463, %v444
  %471 = vst.msk [vmem:[%s3 + $0x38] sm:$0xff] %vm463, %v445
  %472 = vst.msk [vmem:[%s3 + $0x40] sm:$0xff] %vm463, %v446
  %473 = vst.msk [vmem:[%s3 + $0x48] sm:$0xff] %vm463, %v447
  %474 = vst.msk [vmem:[%s3 + $0x50] sm:$0xff] %vm463, %v448
  %475 = vst.msk [vmem:[%s3 + $0x58] sm:$0xff] %vm463, %v449
  %476 = vst.msk [vmem:[%s3 + $0x60] sm:$0xff] %vm463, %v450
  %477 = vst.msk [vmem:[%s3 + $0x68] sm:$0xff] %vm463, %v451
  %478 = vst.msk [vmem:[%s3 + $0x70] sm:$0xff] %vm463, %v452
  %479 = vst.msk [vmem:[%s3 + $0x78] sm:$0xff] %vm463, %v453
  %480 = vst.msk [vmem:[%s3 + $0x80] sm:$0xff] %vm463, %v454
  %481 = vst.msk [vmem:[%s3 + $0x88] sm:$0xff] %vm463, %v455
  %482 = vst.msk [vmem:[%s3 + $0x90] sm:$0xff] %vm463, %v456
  %483 = vst.msk [vmem:[%s3 + $0x98] sm:$0xff] %vm463, %v457
  %484 = vst.msk [vmem:[%s3 + $0xa0] sm:$0xff] %vm463, %v458
  %485 = vst.msk [vmem:[%s3 + $0xa8] sm:$0xff] %vm463, %v459
  %486 = vst.msk [vmem:[%s3 + $0xb0] sm:$0xff] %vm463, %v460
  %487 = vst.msk [vmem:[%s3 + $0xb8] sm:$0xff] %vm463, %v461
  %488 = vst.msk [vmem:[%s3 + $0xc0] sm:$0xff] %vm463, %v462
  // Predicated region
  $region14: #{net_forward.4} parent=0 // pred_check
    _
  $region15: #{net_forward.4} parent=0 // pred_check_branch
    %490 = sbr.rel (0) target = $region17
  $region16: #{net_forward.4} parent=0 // pred_region
    _
  $region17: #{net_forward.4} parent=0 // pred_fallthru
    _
  // Predicated region
  $region18: #{net_forward.4} parent=0 // pred_check
    _
  $region19: #{net_forward.4} parent=0 // pred_check_branch
    %492 = sbr.rel (0) target = $region21
  $region20: #{net_forward.4} parent=0 // pred_region
    _
  $region21: #{net_forward.4} parent=0 // pred_fallthru
    _

// kernel: net_forward.5
$region0: #{net_forward.5}
  #allocation0 [shape = 'u32[]', space=smem, size = 0x4, offset = 0x4, fixed_abs, tag = 'smem constant byte address 0x4 - core index']
  #allocation1 [shape = 'u32[144,128]{1,0:T(1,128)}', space=vmem, size = 0x12000, scoped, tag = 'internal scratch']
  %s0 = inlined_call_operand.vmem [shape: bf16[2,400], index: 0, kind: input, shape index: {}]
  %s1 = inlined_call_operand.vmem [shape: bf16[400,128], index: 1, kind: input, shape index: {}]
  %s2 = inlined_call_operand.vmem [shape: f32[1,128], index: 2, kind: input, shape index: {}]
  %s3 = inlined_call_operand.vmem [shape: bf16[128,128], index: 3, kind: input, shape index: {}]
  %s4 = inlined_call_operand.vmem [shape: f32[1,128], index: 4, kind: input, shape index: {}]
  %s5 = inlined_call_operand.vmem [shape: bf16[128,128], index: 5, kind: input, shape index: {}]
  %s6 = inlined_call_operand.vmem [shape: f32[1,128], index: 6, kind: input, shape index: {}]
  %s7 = inlined_call_operand.hbm [shape: f32[2,128], index: 7, kind: output, shape index: {}]
  %s8 = sld [smem:[#allocation0]]
  $region38: #{net_forward.5} parent=0
    _
  %s10 = ssub.s32 1, %s8
  %s11 = scalar_select 0, %s10, %s8
  $region1: #{net_forward.5} parent=0
    #allocation2 [shape = 'u8[1024]{0}', space=vmem, size = 0x400, scoped, tag = 'output window, operand 0, single buffered']
    #allocation3 [shape = 's32[1]{0}', space=sflag, size = 0x4, scoped, tag = 'scoped memory for net_forward.5']
    %12 = vsyncpa [#allocation3], 0
    // Predicated region
    $region2: #{net_forward.5} parent=1 // pred_check
      _
    $region3: #{net_forward.5} parent=1 // pred_check_branch
      %14 = sbr.rel (0) target = $region5
    $region4: #{net_forward.5} parent=1 // pred_region
      _
    $region5: #{net_forward.5} parent=1 // pred_fallthru
      _
    // Predicated region
    $region6: #{net_forward.5} parent=1 // pred_check
      _
    $region7: #{net_forward.5} parent=1 // pred_check_branch
      %16 = sbr.rel (0) target = $region9
    $region8: #{net_forward.5} parent=1 // pred_region
      _
    $region9: #{net_forward.5} parent=1 // pred_fallthru
      _
    // Predicated region
    $region10: #{net_forward.5} parent=1 // pred_check
      _
    $region11: #{net_forward.5} parent=1 // pred_check_branch
      %18 = sbr.rel (0) target = $region13
    $region12: #{net_forward.5} parent=1 // pred_region
      _
    $region13: #{net_forward.5} parent=1 // pred_fallthru
      _
    // Predicated region
    $region14: #{net_forward.5} parent=1 // pred_check
      _
    $region15: #{net_forward.5} parent=1 // pred_check_branch
      %20 = sbr.rel (0) target = $region17
    $region16: #{net_forward.5} parent=1 // pred_region
      _
    $region17: #{net_forward.5} parent=1 // pred_fallthru
      _
    // Predicated region
    $region18: #{net_forward.5} parent=1 // pred_check
      _
    $region19: #{net_forward.5} parent=1 // pred_check_branch
      %22 = sbr.rel (0) target = $region21
    $region20: #{net_forward.5} parent=1 // pred_region
      _
    $region21: #{net_forward.5} parent=1 // pred_fallthru
      _
    // Predicated region
    $region22: #{net_forward.5} parent=1 // pred_check
      _
    $region23: #{net_forward.5} parent=1 // pred_check_branch
      %24 = sbr.rel (0) target = $region25
    $region24: #{net_forward.5} parent=1 // pred_region
      _
    $region25: #{net_forward.5} parent=1 // pred_fallthru
      _
    // Predicated region
    $region26: #{net_forward.5} parent=1 // pred_check
      _
    $region27: #{net_forward.5} parent=1 // pred_check_branch
      %26 = sbr.rel (0) target = $region29
    $region28: #{net_forward.5} parent=1 // pred_region
      _
    $region29: #{net_forward.5} parent=1 // pred_fallthru
      _
    %v28 = vld [vmem:[%s0] sm:$0xf]
    %v29 = vld [vmem:[%s1] sm:$0xf]
    %v30 = vld [vmem:[%s1 + $0x4] sm:$0xf]
    %v31 = vld [vmem:[%s1 + $0x8] sm:$0xf]
    %v32 = vld [vmem:[%s1 + $0xc] sm:$0xf]
    %v33 = vld [vmem:[%s1 + $0x10] sm:$0xf]
    %v34 = vld [vmem:[%s1 + $0x14] sm:$0xf]
    %v35 = vld [vmem:[%s1 + $0x18] sm:$0xf]
    %v36 = vld [vmem:[%s1 + $0x1c] sm:$0xf]
    %v37 = vld [vmem:[%s1 + $0x20] sm:$0xf]
    %v38 = vld [vmem:[%s1 + $0x24] sm:$0xf]
    %v39 = vld [vmem:[%s1 + $0x28] sm:$0xf]
    %v40 = vld [vmem:[%s1 + $0x2c] sm:$0xf]
    %v41 = vld [vmem:[%s1 + $0x30] sm:$0xf]
    %v42 = vld [vmem:[%s1 + $0x34] sm:$0xf]
    %v43 = vld [vmem:[%s1 + $0x38] sm:$0xf]
    %v44 = vld [vmem:[%s1 + $0x3c] sm:$0xf]
    %v45 = vld [vmem:[%s1 + $0x40] sm:$0xf]
    %v46 = vld [vmem:[%s1 + $0x44] sm:$0xf]
    %v47 = vld [vmem:[%s1 + $0x48] sm:$0xf]
    %v48 = vld [vmem:[%s1 + $0x4c] sm:$0xf]
    %v49 = vld [vmem:[%s1 + $0x50] sm:$0xf]
    %v50 = vld [vmem:[%s1 + $0x54] sm:$0xf]
    %v51 = vld [vmem:[%s1 + $0x58] sm:$0xf]
    %v52 = vld [vmem:[%s1 + $0x5c] sm:$0xf]
    %v53 = vld [vmem:[%s1 + $0x60] sm:$0xf]
    %v54 = vld [vmem:[%s1 + $0x64] sm:$0xf]
    %v55 = vld [vmem:[%s1 + $0x68] sm:$0xf]
    %v56 = vld [vmem:[%s1 + $0x6c] sm:$0xf]
    %v57 = vld [vmem:[%s1 + $0x70] sm:$0xf]
    %v58 = vld [vmem:[%s1 + $0x74] sm:$0xf]
    %v59 = vld [vmem:[%s1 + $0x78] sm:$0xf]
    %v60 = vld [vmem:[%s1 + $0x7c] sm:$0xf]
    %v61 = vld [vmem:[%s1 + $0x80] sm:$0xf]
    %v62 = vld [vmem:[%s1 + $0x84] sm:$0xf]
    %v63 = vld [vmem:[%s1 + $0x88] sm:$0xf]
    %v64 = vld [vmem:[%s1 + $0x8c] sm:$0xf]
    %v65 = vld [vmem:[%s1 + $0x90] sm:$0xf]
    %v66 = vld [vmem:[%s1 + $0x94] sm:$0xf]
    %v67 = vld [vmem:[%s1 + $0x98] sm:$0xf]
    %v68 = vld [vmem:[%s1 + $0x9c] sm:$0xf]
    %v69 = vld [vmem:[%s1 + $0xa0] sm:$0xf]
    %v70 = vld [vmem:[%s1 + $0xa4] sm:$0xf]
    %v71 = vld [vmem:[%s1 + $0xa8] sm:$0xf]
    %v72 = vld [vmem:[%s1 + $0xac] sm:$0xf]
    %v73 = vld [vmem:[%s1 + $0xb0] sm:$0xf]
    %v74 = vld [vmem:[%s1 + $0xb4] sm:$0xf]
    %v75 = vld [vmem:[%s1 + $0xb8] sm:$0xf]
    %v76 = vld [vmem:[%s1 + $0xbc] sm:$0xf]
    %v77 = vld [vmem:[%s1 + $0xc0] sm:$0xf]
    %v78 = vld [vmem:[%s1 + $0xc4] sm:$0xf]
    %v79 = vld [vmem:[%s2] sm:$0x1]
    %v81 = vlaneseq
    %v82 = vshrl.u32 %v81, 7
    %v83 = vsub.s32 0, %v82
    %v84 = vrot.slane %v79, %v83
    %v88 = vunpack.c.l.s4 1966171168
    %v89 = vunpack.c.0.s8 %v88
    %v90 = vlaneseq
    %v91 = vshrl.u32 %v90, 7
    %v92 = vsub.s32 %v89, %v91
    %v93 = vrot.slane %v28, %v92
    %v94 = vcombine.high %v93, %v93
    %v96 = vunpack.c.l.s4 1966171168
    %v97 = vunpack.c.0.s8 %v96
    %v98 = vlaneseq
    %v99 = vshrl.u32 %v98, 7
    %v100 = vsub.s32 %v97, %v99
    %v101 = vrot.slane %v93, %v100
    %v103 = vunpack.c.l.s4 1966171168
    %v104 = vunpack.c.0.s8 %v103
    %v105 = vlaneseq
    %v106 = vshrl.u32 %v105, 7
    %v107 = vsub.s32 %v104, %v106
    %v108 = vrot.slane %v94, %v107
    %v109 = vcombine.high %v101, %v101
    %v110 = vcombine.high %v108, %v108
    %v164 = vunpack.c.l.b16 %v29
    %v165 = vunpack.c.l.b16 %v30
    %v166 = vunpack.c.l.b16 %v31
    %v167 = vunpack.c.l.b16 %v32
    %v168 = vunpack.c.l.b16 %v33
    %v169 = vunpack.c.l.b16 %v34
    %v170 = vunpack.c.l.b16 %v35
    %v171 = vunpack.c.l.b16 %v36
    %v172 = vunpack.c.l.b16 %v37
    %v173 = vunpack.c.l.b16 %v38
    %v174 = vunpack.c.l.b16 %v39
    %v175 = vunpack.c.l.b16 %v40
    %v176 = vunpack.c.l.b16 %v41
    %v177 = vunpack.c.l.b16 %v42
    %v178 = vunpack.c.l.b16 %v43
    %v179 = vunpack.c.l.b16 %v44
    %v180 = vunpack.c.l.b16 %v45
    %v181 = vunpack.c.l.b16 %v46
    %v182 = vunpack.c.l.b16 %v47
    %v183 = vunpack.c.l.b16 %v48
    %v184 = vunpack.c.l.b16 %v49
    %v185 = vunpack.c.l.b16 %v50
    %v186 = vunpack.c.l.b16 %v51
    %v187 = vunpack.c.l.b16 %v52
    %v188 = vunpack.c.l.b16 %v53
    %v189 = vunpack.c.l.b16 %v54
    %v190 = vunpack.c.l.b16 %v55
    %v191 = vunpack.c.l.b16 %v56
    %v192 = vunpack.c.l.b16 %v57
    %v193 = vunpack.c.l.b16 %v58
    %v194 = vunpack.c.l.b16 %v59
    %v195 = vunpack.c.l.b16 %v60
    %v196 = vunpack.c.l.b16 %v61
    %v197 = vunpack.c.l.b16 %v62
    %v198 = vunpack.c.l.b16 %v63
    %v199 = vunpack.c.l.b16 %v64
    %v200 = vunpack.c.l.b16 %v65
    %v201 = vunpack.c.l.b16 %v66
    %v202 = vunpack.c.l.b16 %v67
    %v203 = vunpack.c.l.b16 %v68
    %v204 = vunpack.c.l.b16 %v69
    %v205 = vunpack.c.l.b16 %v70
    %v206 = vunpack.c.l.b16 %v71
    %v207 = vunpack.c.l.b16 %v72
    %v208 = vunpack.c.l.b16 %v73
    %v209 = vunpack.c.l.b16 %v74
    %v210 = vunpack.c.l.b16 %v75
    %v211 = vunpack.c.l.b16 %v76
    %v212 = vunpack.c.l.b16 %v77
    %v213 = vunpack.c.l.b16 %v78
    %v214 = vpack.c.b16 %v165, %v164
    %v215 = vpack.c.b16 %v167, %v166
    %v216 = vpack.c.b16 %v169, %v168
    %v217 = vpack.c.b16 %v171, %v170
    %v218 = vpack.c.b16 %v173, %v172
    %v219 = vpack.c.b16 %v175, %v174
    %v220 = vpack.c.b16 %v177, %v176
    %v221 = vpack.c.b16 %v179, %v178
    %v222 = vpack.c.b16 %v181, %v180
    %v223 = vpack.c.b16 %v183, %v182
    %v224 = vpack.c.b16 %v185, %v184
    %v225 = vpack.c.b16 %v187, %v186
    %v226 = vpack.c.b16 %v189, %v188
    %v227 = vpack.c.b16 %v191, %v190
    %v228 = vpack.c.b16 %v193, %v192
    %v229 = vpack.c.b16 %v195, %v194
    %v230 = vpack.c.b16 %v197, %v196
    %v231 = vpack.c.b16 %v199, %v198
    %v232 = vpack.c.b16 %v201, %v200
    %v233 = vpack.c.b16 %v203, %v202
    %v234 = vpack.c.b16 %v205, %v204
    %v235 = vpack.c.b16 %v207, %v206
    %v236 = vpack.c.b16 %v209, %v208
    %v237 = vpack.c.b16 %v211, %v210
    %v238 = vpack.c.b16 %v213, %v212
    %vm264 = vcmask 130048
    %v266 = vsel %vm264, %v110, 0
    %268 = vmatprep.subr.bf16.mxu0 0
    %269 = vmatpush1.bf16.msra.mxu0 %v221
    %270 = vmatprep.subr.bf16.mxu0 0
    %271 = vmatpush1.bf16.msra.mxu0 %v220
    %272 = vmatprep.subr.bf16.mxu0 0
    %273 = vmatpush1.bf16.msra.mxu0 %v219
    %274 = vmatprep.subr.bf16.mxu0 0
    %275 = vmatpush1.bf16.msra.mxu0 %v218
    %276 = vmatprep.subr.bf16.mxu0 0
    %277 = vmatpush1.bf16.msra.mxu0 %v217
    %278 = vmatprep.subr.bf16.mxu0 0
    %279 = vmatpush1.bf16.msra.mxu0 %v216
    %280 = vmatprep.subr.bf16.mxu0 0
    %281 = vmatpush1.bf16.msra.mxu0 %v215
    %282 = vmatprep.subr.bf16.mxu0 0
    %283 = vmatpush1.bf16.msra.mxu0 %v214
    %284 = vmatprep.subr.bf16.mxu0 0
    %285 = vmatpush2.bf16.msra.mxu0 %v229
    %286 = vmatprep.subr.bf16.mxu0 0
    %287 = vmatpush2.bf16.msra.mxu0 %v228
    %288 = vmatprep.subr.bf16.mxu0 0
    %289 = vmatpush2.bf16.msra.mxu0 %v227
    %290 = vmatprep.subr.bf16.mxu0 0
    %291 = vmatpush2.bf16.msra.mxu0 %v226
    %292 = vmatprep.subr.bf16.mxu0 0
    %293 = vmatpush2.bf16.msra.mxu0 %v225
    %294 = vmatprep.subr.bf16.mxu0 0
    %295 = vmatpush2.bf16.msra.mxu0 %v224
    %296 = vmatprep.subr.bf16.mxu0 0
    %297 = vmatpush2.bf16.msra.mxu0 %v223
    %298 = vmatprep.subr.bf16.mxu0 0
    %299 = vmatpush2.bf16.msra.mxu0 %v222
    %300 = vmatprep.mubr.bf16.mxu0 %v108
    %301 = vmatmul.mubr.bf16.gmra.mxu0 %v101
    %v302 = vpop.f32.mrf.mxu0
    %v303 = vadd.f32 %v84, %v302
    %v304 = vpop.f32.mrf.mxu0
    %v305 = vpop.f32.mrf.mxu0
    %v306 = vpop.f32.mrf.mxu0
    %307 = vdwg.mxu0
    %308 = vmatprep.subr.bf16.mxu0 0
    %309 = vmatpush1.bf16.msra.mxu0 %v237
    %310 = vmatprep.subr.bf16.mxu0 0
    %311 = vmatpush1.bf16.msra.mxu0 %v236
    %312 = vmatprep.subr.bf16.mxu0 0
    %313 = vmatpush1.bf16.msra.mxu0 %v235
    %314 = vmatprep.subr.bf16.mxu0 0
    %315 = vmatpush1.bf16.msra.mxu0 %v234
    %316 = vmatprep.subr.bf16.mxu0 0
    %317 = vmatpush1.bf16.msra.mxu0 %v233
    %318 = vmatprep.subr.bf16.mxu0 0
    %319 = vmatpush1.bf16.msra.mxu0 %v232
    %320 = vmatprep.subr.bf16.mxu0 0
    %321 = vmatpush1.bf16.msra.mxu0 %v231
    %322 = vmatprep.subr.bf16.mxu0 0
    %323 = vmatpush1.bf16.msra.mxu0 %v230
    %324 = vmatprep.subr.bf16.mxu0 0
    %325 = vmatpush2.bf16.msra.mxu0 0
    %326 = vmatprep.subr.bf16.mxu0 0
    %327 = vmatpush2.bf16.msra.mxu0 0
    %328 = vmatprep.subr.bf16.mxu0 0
    %329 = vmatpush2.bf16.msra.mxu0 0
    %330 = vmatprep.subr.bf16.mxu0 0
    %331 = vmatpush2.bf16.msra.mxu0 0
    %332 = vmatprep.subr.bf16.mxu0 0
    %333 = vmatpush2.bf16.msra.mxu0 0
    %334 = vmatprep.subr.bf16.mxu0 0
    %335 = vmatpush2.bf16.msra.mxu0 0
    %336 = vmatprep.subr.bf16.mxu0 0
    %337 = vmatpush2.bf16.msra.mxu0 0
    %338 = vmatprep.subr.bf16.mxu0 0
    %339 = vmatpush2.bf16.msra.mxu0 %v238
    %340 = vmatprep.mubr.bf16.mxu0 %v266
    %341 = vmatmul.mubr.bf16.gmra.mxu0 %v109
    %v342 = vpop.f32.mrf.mxu0
    %v343 = vadd.f32 %v303, %v342
    %v344 = vpop.f32.mrf.mxu0
    %v345 = vpop.f32.mrf.mxu0
    %v346 = vpop.f32.mrf.mxu0
    %347 = vdwg.mxu0
    %v348 = vmax.f32 %v343, 0.0
    %v349 = vpack.c.bf16 %v348, %v348
    %v350 = vld [vmem:[%s3] sm:$0xf]
    %v351 = vld [vmem:[%s3 + $0x4] sm:$0xf]
    %v352 = vld [vmem:[%s3 + $0x8] sm:$0xf]
    %v353 = vld [vmem:[%s3 + $0xc] sm:$0xf]
    %v354 = vld [vmem:[%s3 + $0x10] sm:$0xf]
    %v355 = vld [vmem:[%s3 + $0x14] sm:$0xf]
    %v356 = vld [vmem:[%s3 + $0x18] sm:$0xf]
    %v357 = vld [vmem:[%s3 + $0x1c] sm:$0xf]
    %v358 = vld [vmem:[%s3 + $0x20] sm:$0xf]
    %v359 = vld [vmem:[%s3 + $0x24] sm:$0xf]
    %v360 = vld [vmem:[%s3 + $0x28] sm:$0xf]
    %v361 = vld [vmem:[%s3 + $0x2c] sm:$0xf]
    %v362 = vld [vmem:[%s3 + $0x30] sm:$0xf]
    %v363 = vld [vmem:[%s3 + $0x34] sm:$0xf]
    %v364 = vld [vmem:[%s3 + $0x38] sm:$0xf]
    %v365 = vld [vmem:[%s3 + $0x3c] sm:$0xf]
    %v366 = vld [vmem:[%s4] sm:$0x1]
    %v368 = vlaneseq
    %v369 = vshrl.u32 %v368, 7
    %v370 = vsub.s32 0, %v369
    %v371 = vrot.slane %v366, %v370
    %v389 = vunpack.c.l.b16 %v350
    %v390 = vunpack.c.l.b16 %v351
    %v391 = vunpack.c.l.b16 %v352
    %v392 = vunpack.c.l.b16 %v353
    %v393 = vunpack.c.l.b16 %v354
    %v394 = vunpack.c.l.b16 %v355
    %v395 = vunpack.c.l.b16 %v356
    %v396 = vunpack.c.l.b16 %v357
    %v397 = vunpack.c.l.b16 %v358
    %v398 = vunpack.c.l.b16 %v359
    %v399 = vunpack.c.l.b16 %v360
    %v400 = vunpack.c.l.b16 %v361
    %v401 = vunpack.c.l.b16 %v362
    %v402 = vunpack.c.l.b16 %v363
    %v403 = vunpack.c.l.b16 %v364
    %v404 = vunpack.c.l.b16 %v365
    %v405 = vpack.c.b16 %v390, %v389
    %v406 = vpack.c.b16 %v392, %v391
    %v407 = vpack.c.b16 %v394, %v393
    %v408 = vpack.c.b16 %v396, %v395
    %v409 = vpack.c.b16 %v398, %v397
    %v410 = vpack.c.b16 %v400, %v399
    %v411 = vpack.c.b16 %v402, %v401
    %v412 = vpack.c.b16 %v404, %v403
    %421 = vmatprep.subr.bf16.mxu0 0
    %422 = vmatpush1.bf16.msra.mxu0 %v412
    %423 = vmatprep.subr.bf16.mxu0 0
    %424 = vmatpush1.bf16.msra.mxu0 %v411
    %425 = vmatprep.subr.bf16.mxu0 0
    %426 = vmatpush1.bf16.msra.mxu0 %v410
    %427 = vmatprep.subr.bf16.mxu0 0
    %428 = vmatpush1.bf16.msra.mxu0 %v409
    %429 = vmatprep.subr.bf16.mxu0 0
    %430 = vmatpush1.bf16.msra.mxu0 %v408
    %431 = vmatprep.subr.bf16.mxu0 0
    %432 = vmatpush1.bf16.msra.mxu0 %v407
    %433 = vmatprep.subr.bf16.mxu0 0
    %434 = vmatpush1.bf16.msra.mxu0 %v406
    %435 = vmatprep.subr.bf16.mxu0 0
    %436 = vmatpush1.bf16.msra.mxu0 %v405
    %437 = vmatprep.subr.bf16.mxu0 0
    %438 = vmatpush2.bf16.msra.mxu0 0
    %439 = vmatprep.subr.bf16.mxu0 0
    %440 = vmatpush2.bf16.msra.mxu0 0
    %441 = vmatprep.subr.bf16.mxu0 0
    %442 = vmatpush2.bf16.msra.mxu0 0
    %443 = vmatprep.subr.bf16.mxu0 0
    %444 = vmatpush2.bf16.msra.mxu0 0
    %445 = vmatprep.subr.bf16.mxu0 0
    %446 = vmatpush2.bf16.msra.mxu0 0
    %447 = vmatprep.subr.bf16.mxu0 0
    %448 = vmatpush2.bf16.msra.mxu0 0
    %449 = vmatprep.subr.bf16.mxu0 0
    %450 = vmatpush2.bf16.msra.mxu0 0
    %451 = vmatprep.subr.bf16.mxu0 0
    %452 = vmatpush2.bf16.msra.mxu0 0
    %453 = vmatprep.mubr.bf16.mxu0 0
    %454 = vmatmul.mubr.bf16.gmra.mxu0 %v349
    %v455 = vpop.f32.mrf.mxu0
    %v456 = vadd.f32 %v371, %v455
    %v457 = vpop.f32.mrf.mxu0
    %v458 = vpop.f32.mrf.mxu0
    %v459 = vpop.f32.mrf.mxu0
    %460 = vdwg.mxu0
    %v461 = vmax.f32 %v456, 0.0
    %v462 = vpack.c.bf16 %v461, %v461
    %v463 = vld [vmem:[%s5] sm:$0xf]
    %v464 = vld [vmem:[%s5 + $0x4] sm:$0xf]
    %v465 = vld [vmem:[%s5 + $0x8] sm:$0xf]
    %v466 = vld [vmem:[%s5 + $0xc] sm:$0xf]
    %v467 = vld [vmem:[%s5 + $0x10] sm:$0xf]
    %v468 = vld [vmem:[%s5 + $0x14] sm:$0xf]
    %v469 = vld [vmem:[%s5 + $0x18] sm:$0xf]
    %v470 = vld [vmem:[%s5 + $0x1c] sm:$0xf]
    %v471 = vld [vmem:[%s5 + $0x20] sm:$0xf]
    %v472 = vld [vmem:[%s5 + $0x24] sm:$0xf]
    %v473 = vld [vmem:[%s5 + $0x28] sm:$0xf]
    %v474 = vld [vmem:[%s5 + $0x2c] sm:$0xf]
    %v475 = vld [vmem:[%s5 + $0x30] sm:$0xf]
    %v476 = vld [vmem:[%s5 + $0x34] sm:$0xf]
    %v477 = vld [vmem:[%s5 + $0x38] sm:$0xf]
    %v478 = vld [vmem:[%s5 + $0x3c] sm:$0xf]
    %v479 = vld [vmem:[%s6] sm:$0x1]
    %v481 = vlaneseq
    %v482 = vshrl.u32 %v481, 7
    %v483 = vsub.s32 0, %v482
    %v484 = vrot.slane %v479, %v483
    %v502 = vunpack.c.l.b16 %v463
    %v503 = vunpack.c.l.b16 %v464
    %v504 = vunpack.c.l.b16 %v465
    %v505 = vunpack.c.l.b16 %v466
    %v506 = vunpack.c.l.b16 %v467
    %v507 = vunpack.c.l.b16 %v468
    %v508 = vunpack.c.l.b16 %v469
    %v509 = vunpack.c.l.b16 %v470
    %v510 = vunpack.c.l.b16 %v471
    %v511 = vunpack.c.l.b16 %v472
    %v512 = vunpack.c.l.b16 %v473
    %v513 = vunpack.c.l.b16 %v474
    %v514 = vunpack.c.l.b16 %v475
    %v515 = vunpack.c.l.b16 %v476
    %v516 = vunpack.c.l.b16 %v477
    %v517 = vunpack.c.l.b16 %v478
    %v518 = vpack.c.b16 %v503, %v502
    %v519 = vpack.c.b16 %v505, %v504
    %v520 = vpack.c.b16 %v507, %v506
    %v521 = vpack.c.b16 %v509, %v508
    %v522 = vpack.c.b16 %v511, %v510
    %v523 = vpack.c.b16 %v513, %v512
    %v524 = vpack.c.b16 %v515, %v514
    %v525 = vpack.c.b16 %v517, %v516
    %534 = vmatprep.subr.bf16.mxu0 0
    %535 = vmatpush1.bf16.msra.mxu0 %v525
    %536 = vmatprep.subr.bf16.mxu0 0
    %537 = vmatpush1.bf16.msra.mxu0 %v524
    %538 = vmatprep.subr.bf16.mxu0 0
    %539 = vmatpush1.bf16.msra.mxu0 %v523
    %540 = vmatprep.subr.bf16.mxu0 0
    %541 = vmatpush1.bf16.msra.mxu0 %v522
    %542 = vmatprep.subr.bf16.mxu0 0
    %543 = vmatpush1.bf16.msra.mxu0 %v521
    %544 = vmatprep.subr.bf16.mxu0 0
    %545 = vmatpush1.bf16.msra.mxu0 %v520
    %546 = vmatprep.subr.bf16.mxu0 0
    %547 = vmatpush1.bf16.msra.mxu0 %v519
    %548 = vmatprep.subr.bf16.mxu0 0
    %549 = vmatpush1.bf16.msra.mxu0 %v518
    %550 = vmatprep.subr.bf16.mxu0 0
    %551 = vmatpush2.bf16.msra.mxu0 0
    %552 = vmatprep.subr.bf16.mxu0 0
    %553 = vmatpush2.bf16.msra.mxu0 0
    %554 = vmatprep.subr.bf16.mxu0 0
    %555 = vmatpush2.bf16.msra.mxu0 0
    %556 = vmatprep.subr.bf16.mxu0 0
    %557 = vmatpush2.bf16.msra.mxu0 0
    %558 = vmatprep.subr.bf16.mxu0 0
    %559 = vmatpush2.bf16.msra.mxu0 0
    %560 = vmatprep.subr.bf16.mxu0 0
    %561 = vmatpush2.bf16.msra.mxu0 0
    %562 = vmatprep.subr.bf16.mxu0 0
    %563 = vmatpush2.bf16.msra.mxu0 0
    %564 = vmatprep.subr.bf16.mxu0 0
    %565 = vmatpush2.bf16.msra.mxu0 0
    %566 = vmatprep.mubr.bf16.mxu0 0
    %567 = vmatmul.mubr.bf16.gmra.mxu0 %v462
    %v568 = vpop.f32.mrf.mxu0
    %v569 = vadd.f32 %v484, %v568
    %v570 = vpop.f32.mrf.mxu0
    %v571 = vpop.f32.mrf.mxu0
    %v572 = vpop.f32.mrf.mxu0
    %573 = vdwg.mxu0
    %574 = vst [vmem:[#allocation2] sm:$0x3] %v569
    // Predicated region
    $region30: #{net_forward.5} parent=1 // pred_check
      _
    $region31: #{net_forward.5} parent=1 // pred_check_branch
      %576 = sbr.rel (0) target = $region33
    $region32: #{net_forward.5} parent=1 // pred_region
      %s578 = ssub.s32 32, 32
      %579 = vsyncadd [#allocation3], %s578
      %s581 = sshll.u32 [#allocation2], 4
      %s582 = int_to_ptr.vmem [resolvable:$true] %s581
      %584 = dma.vmem_to_hbm [thread:$0]  %s582, 32, %s7, [#allocation3]
    $region33: #{net_forward.5} parent=1 // pred_fallthru
      _
    // Predicated region
    $region34: #{net_forward.5} parent=1 // pred_check
      _
    $region35: #{net_forward.5} parent=1 // pred_check_branch
      %586 = sbr.rel (0) target = $region37
    $region36: #{net_forward.5} parent=1 // pred_region
      %587 = dma.done [#allocation3], 32
    $region37: #{net_forward.5} parent=1 // pred_fallthru
      _
    %588 = vsyncpa [#allocation3], 1

</llo_original>
